<compile_context>
chip_gen: v6e
topology: v6e:2x2x1
jax: 0.10.0
libtpu: 0.0.40
codegen_flags: <defaults>
</compile_context>

<pallas_src>
import jax
import jax.numpy as jnp
from jax.experimental import pallas as pl
from jax.experimental.pallas import tpu as pltpu

INPUT_SIZE = 10
HIDDEN_SIZE = 20
NUM_LAYERS = 2

HG = 32                       # per-gate lane block: HIDDEN_SIZE padded to 32
NG = 4                        # gates i, f, g, o (nn.LSTM order)
GW = NG * HG                  # 128 = packed gate width (one vreg of lanes)
D_PAD = 16                    # input features 10 + ones column (bias) + pad
BIAS_COL = INPUT_SIZE         # ones-column index carrying the fused layer-0 bias


def _round_up(n, m):
    return ((n + m - 1) // m) * m


def make_fused_kernel(T, B, Bp):
    H, Kh = HIDDEN_SIZE, HG

    def cell(g, c):
        """One LSTM cell update. g: (Bp, 128) f32 packed [i|f|g|o] pre-acts."""
        sig = jax.nn.sigmoid(g)              # whole-vreg EUP pass
        tnh = jnp.tanh(g)                    # whole-vreg EUP pass
        i_g = sig[:, 0 * Kh:1 * Kh]          # 32-lane sub-blocks (lane shifts)
        f_g = sig[:, 1 * Kh:2 * Kh]
        g_g = tnh[:, 2 * Kh:3 * Kh]
        o_g = sig[:, 3 * Kh:4 * Kh]
        c_new = f_g * c + i_g * g_g
        h_new = o_g * jnp.tanh(c_new)
        return h_new, c_new

    def kernel(x_ref, w0_ref, w1_ref, fc_ref, out_ref):
        # Layer-0 packed weights (bf16): rows [0:D_PAD) = w_ih (+ fused bias on
        # the ones row), rows [D_PAD:D_PAD+Kh) = w_hh.
        w0_ih = w0_ref[0:D_PAD, :]
        w0_hh = w0_ref[D_PAD:D_PAD + Kh, :]
        # Layer-1 stacked weights (bf16): rows [0:Kh) act on h0 (w_ih_l1 + bias
        # row at 20), rows [Kh:2*Kh) act on h1 (w_hh_l1).
        w1_ih = w1_ref[0:Kh, :]
        w1_hh = w1_ref[Kh:2 * Kh, :]

        # Hoisted layer-0 input projection (+bias) for ALL timesteps: one MXU
        # matmul, removed from the serial recurrence.
        gx0 = jnp.dot(x_ref[...], w0_ih, preferred_element_type=jnp.float32)

        # One-hot "ones lane" at lane H (=20, always exactly 0 in h0) that
        # drives the fused layer-1 bias row of w1.
        ones_lane = (jax.lax.broadcasted_iota(jnp.int32, (Bp, Kh), 1) == H
                     ).astype(jnp.float32)

        h0 = jnp.zeros((Bp, Kh), jnp.float32)
        c0 = jnp.zeros((Bp, Kh), jnp.float32)
        h1 = jnp.zeros((Bp, Kh), jnp.float32)
        c1 = jnp.zeros((Bp, Kh), jnp.float32)

        # Wavefront over the two layers: step s runs the layer-1 cell for
        # t = s-1 (reads h0 produced in step s-1, i.e. BEFORE this step's
        # layer-0 update) and the layer-0 cell for t = s.
        for s in range(T + 1):
            if s >= 1:
                h0_in = (h0 + ones_lane).astype(jnp.bfloat16)
                g1 = (jnp.dot(h0_in, w1_ih, preferred_element_type=jnp.float32)
                      + jnp.dot(h1.astype(jnp.bfloat16), w1_hh,
                                preferred_element_type=jnp.float32))
                h1, c1 = cell(g1, c1)
            if s < T:
                g0 = gx0[s * Bp:(s + 1) * Bp, :] + jnp.dot(
                    h0.astype(jnp.bfloat16), w0_hh,
                    preferred_element_type=jnp.float32)
                h0, c0 = cell(g0, c0)

        # Final FC on the last layer-1 hidden state: lane reduce + bias.
        w_fc = fc_ref[0:1, 0:Kh]                    # (1, 32) f32
        b_fc = fc_ref[1:2, 0:1]                     # (1, 1)  f32
        y = jnp.sum(h1 * w_fc, axis=-1, keepdims=True) + b_fc
        out_ref[...] = y[:B, :]

    return kernel


@jax.jit
def lstm_forward(packed, x_btd):
    """x_btd: (B, T, input_size), batch_first.  Returns (B, 1) = fc(h_last)."""
    x = jnp.transpose(x_btd, (1, 0, 2)).astype(jnp.float32)     # (T, B, D)
    T, B, D = x.shape
    Bp = _round_up(B, 8)                                        # sublane align
    # Pad batch to a sublane multiple, pad features to D_PAD, and set the
    # ones-column that carries the fused layer-0 bias through the hoisted
    # input projection.  Padded batch rows produce bounded garbage that never
    # mixes across rows and is sliced away at the end.
    x_p = jnp.zeros((T, Bp, D_PAD), jnp.float32)
    x_p = x_p.at[:, :B, :D].set(x)
    x_p = x_p.at[:, :, BIAS_COL].set(1.0)
    x_flat = x_p.reshape(T * Bp, D_PAD).astype(jnp.bfloat16)

    kernel = make_fused_kernel(T, B, Bp)
    return pl.pallas_call(
        kernel,
        out_shape=jax.ShapeDtypeStruct((B, 1), jnp.float32),
        in_specs=[pl.BlockSpec(memory_space=pltpu.MemorySpace.VMEM)] * 4,
        out_specs=pl.BlockSpec(memory_space=pltpu.MemorySpace.VMEM),
    )(x_flat, packed["w0"], packed["w1"], packed["fc"])


def init_params(key, input_size=INPUT_SIZE, hidden_size=HIDDEN_SIZE,
                num_layers=NUM_LAYERS):
    """Deterministic init mirroring nn.LSTM / nn.Linear (U(-k, k)).

    Returns raw torch-layout weights (reference check) plus the packed,
    bias-fused, bf16 tensors the kernel consumes.  Packed column layout:
    gate g (nn.LSTM order i,f,g,o) unit j -> lane g*HG + j; lanes [H:HG) of
    each gate block are zero so padded state lanes stay exactly 0.
    """
    assert num_layers == 2, "fused wavefront kernel is specialized for 2 layers"
    H, Kh = hidden_size, HG
    k = 1.0 / jnp.sqrt(H)

    def pack_gate_cols(mat_t):
        """(rows, 4*H) input-major -> (rows, 128) packed gate columns."""
        rows = mat_t.shape[0]
        out = jnp.zeros((rows, GW), jnp.float32)
        for g in range(NG):
            out = out.at[:, g * Kh:g * Kh + H].set(mat_t[:, g * H:(g + 1) * H])
        return out

    raw_layers, packed_mats = [], []
    for layer in range(num_layers):
        d_in = input_size if layer == 0 else H
        key, k1, k2, k3, k4 = jax.random.split(key, 5)
        w_ih = jax.random.uniform(k1, (4 * H, d_in), minval=-k, maxval=k,
                                  dtype=jnp.float32)
        w_hh = jax.random.uniform(k2, (4 * H, H), minval=-k, maxval=k,
                                  dtype=jnp.float32)
        b_ih = jax.random.uniform(k3, (4 * H,), minval=-k, maxval=k,
                                  dtype=jnp.float32)
        b_hh = jax.random.uniform(k4, (4 * H,), minval=-k, maxval=k,
                                  dtype=jnp.float32)
        raw_layers.append({"w_ih": w_ih, "w_hh": w_hh,
                           "b_ih": b_ih, "b_hh": b_hh})
        packed_mats.append((pack_gate_cols(w_ih.T),
                            pack_gate_cols(w_hh.T),
                            pack_gate_cols((b_ih + b_hh)[None, :])))

    # Layer 0: [w_ih rows 0:10 ; fused bias on ones row 10 ; pad] over D_PAD
    # rows, then w_hh over Kh rows -> single (D_PAD+Kh, 128) bf16 tensor.
    wih0, whh0, b0 = packed_mats[0]
    w0 = jnp.zeros((D_PAD + Kh, GW), jnp.float32)
    w0 = w0.at[:input_size, :].set(wih0)
    w0 = w0.at[BIAS_COL, :].set(b0[0])
    w0 = w0.at[D_PAD:D_PAD + H, :].set(whh0)

    # Layer 1 (wavefront-fused): rows 0:20 = w_ih (input = layer-0 h), row 20 =
    # fused bias (driven by the ones lane added to h0), rows 32:52 = w_hh.
    wih1, whh1, b1 = packed_mats[1]
    w1 = jnp.zeros((2 * Kh, GW), jnp.float32)
    w1 = w1.at[:H, :].set(wih1)
    w1 = w1.at[H, :].set(b1[0])
    w1 = w1.at[Kh:Kh + H, :].set(whh1)

    key, k5, k6 = jax.random.split(key, 3)
    w_fc = jax.random.uniform(k5, (1, H), minval=-k, maxval=k, dtype=jnp.float32)
    b_fc = jax.random.uniform(k6, (1,), minval=-k, maxval=k, dtype=jnp.float32)
    fc = jnp.zeros((2, GW), jnp.float32)
    fc = fc.at[0, :H].set(w_fc[0])
    fc = fc.at[1, 0].set(b_fc[0])

    return {
        "raw": {"layers": raw_layers, "w_fc": w_fc, "b_fc": b_fc},
        "packed": {"w0": w0.astype(jnp.bfloat16),
                   "w1": w1.astype(jnp.bfloat16),
                   "fc": fc},
    }


def ref_forward(raw, x_btd):
    """Pure-JAX f32 reference of the nn.LSTM + fc forward."""
    xt = jnp.transpose(x_btd, (1, 0, 2)).astype(jnp.float32)
    B = x_btd.shape[0]
    for lp in raw["layers"]:
        H = lp["w_hh"].shape[1]
        h = jnp.zeros((B, H), jnp.float32)
        c = jnp.zeros((B, H), jnp.float32)
        outs = []
        for t in range(xt.shape[0]):
            gates = (xt[t] @ lp["w_ih"].T + h @ lp["w_hh"].T
                     + lp["b_ih"] + lp["b_hh"])
            i = jax.nn.sigmoid(gates[:, 0 * H:1 * H])
            f = jax.nn.sigmoid(gates[:, 1 * H:2 * H])
            g = jnp.tanh(gates[:, 2 * H:3 * H])
            o = jax.nn.sigmoid(gates[:, 3 * H:4 * H])
            c = f * c + i * g
            h = o * jnp.tanh(c)
            outs.append(h)
        xt = jnp.stack(outs, axis=0)
    return xt[-1] @ raw["w_fc"].T + raw["b_fc"]


if __name__ == "__main__":
    key = jax.random.PRNGKey(0)
    key_p, key_x = jax.random.split(key)
    params = init_params(key_p)

    B, T = 2, 8
    x = jax.random.normal(key_x, (B, T, INPUT_SIZE), dtype=jnp.float32)

    out = lstm_forward(params["packed"], x)
    jax.block_until_ready(out)
    assert out.shape == (B, 1), out.shape

    ref = ref_forward(params["raw"], x)
    # bf16 MXU operands (f32 accumulate / gate math) => looser tolerance than
    # the pure-f32 version, as sanctioned by the perf review.
    max_err = float(jnp.max(jnp.abs(out - ref)))
    assert max_err < 2e-2, f"max abs error vs f32 reference: {max_err}"
    print("KERNEL_OK")
</pallas_src>

<mosaic_0001>
module attributes {stable_mosaic.version = 11 : i64} {
  func.func @kernel(%arg0: memref<64x16xbf16, #tpu.memory_space<vmem>>, %arg1: memref<48x128xbf16, #tpu.memory_space<vmem>>, %arg2: memref<64x128xbf16, #tpu.memory_space<vmem>>, %arg3: memref<2x128xf32, #tpu.memory_space<vmem>>, %arg4: memref<2x1xf32, #tpu.memory_space<vmem>>) attributes {dimension_semantics = [], scalar_prefetch = 0 : i64, scratch_operands = 0 : i64, tpu.core_type = #tpu.core_type<tc>} {
    %c0 = arith.constant 0 : index
    %c0_0 = arith.constant 0 : index
    %0 = vector.load %arg1[%c0, %c0_0] : memref<48x128xbf16, #tpu.memory_space<vmem>>, vector<16x128xbf16>
    %c16 = arith.constant 16 : index
    %c0_1 = arith.constant 0 : index
    %1 = vector.load %arg1[%c16, %c0_1] : memref<48x128xbf16, #tpu.memory_space<vmem>>, vector<32x128xbf16>
    %c0_2 = arith.constant 0 : index
    %c0_3 = arith.constant 0 : index
    %2 = vector.load %arg2[%c0_2, %c0_3] : memref<64x128xbf16, #tpu.memory_space<vmem>>, vector<32x128xbf16>
    %c32 = arith.constant 32 : index
    %c0_4 = arith.constant 0 : index
    %3 = vector.load %arg2[%c32, %c0_4] : memref<64x128xbf16, #tpu.memory_space<vmem>>, vector<32x128xbf16>
    %c0_5 = arith.constant 0 : index
    %c0_6 = arith.constant 0 : index
    %4 = vector.load %arg0[%c0_5, %c0_6] : memref<64x16xbf16, #tpu.memory_space<vmem>>, vector<64x16xbf16>
    %cst = arith.constant dense<0.000000e+00> : vector<64x128xf32>
    %5 = tpu.matmul %4, %0, %cst {dimension_numbers = #tpu.dot_dimension_numbers<[1], [0], [0], [1], [0, 0, 1, 1], [], []>} : vector<64x16xbf16>, vector<16x128xbf16>, vector<64x128xf32> -> vector<64x128xf32>
    %6 = tpu.iota {dimensions = array<i32: 1>} : vector<8x32xi32>
    %c20_i32 = arith.constant 20 : i32
    %7 = vector.broadcast %c20_i32 : i32 to vector<8x32xi32>
    %8 = arith.cmpi eq, %6, %7 : vector<8x32xi32>
    %9 = arith.extui %8 : vector<8x32xi1> to vector<8x32xi32>
    %10 = arith.sitofp %9 : vector<8x32xi32> to vector<8x32xf32>
    %cst_7 = arith.constant 0.000000e+00 : f32
    %11 = vector.broadcast %cst_7 : f32 to vector<8x32xf32>
    %cst_8 = arith.constant 0.000000e+00 : f32
    %12 = vector.broadcast %cst_8 : f32 to vector<8x32xf32>
    %cst_9 = arith.constant 0.000000e+00 : f32
    %13 = vector.broadcast %cst_9 : f32 to vector<8x32xf32>
    %cst_10 = arith.constant 0.000000e+00 : f32
    %14 = vector.broadcast %cst_10 : f32 to vector<8x32xf32>
    %15 = vector.extract_strided_slice %5 {offsets = [0, 0], sizes = [8, 128], strides = [1, 1]} : vector<64x128xf32> to vector<8x128xf32>
    %16 = arith.truncf %11 : vector<8x32xf32> to vector<8x32xbf16>
    %cst_11 = arith.constant dense<0.000000e+00> : vector<8x128xf32>
    %17 = tpu.matmul %16, %1, %cst_11 {dimension_numbers = #tpu.dot_dimension_numbers<[1], [0], [0], [1], [0, 0, 1, 1], [], []>} : vector<8x32xbf16>, vector<32x128xbf16>, vector<8x128xf32> -> vector<8x128xf32>
    %18 = arith.addf %15, %17 : vector<8x128xf32>
    %19 = arith.negf %18 : vector<8x128xf32>
    %20 = math.exp %19 : vector<8x128xf32>
    %cst_12 = arith.constant 1.000000e+00 : f32
    %21 = vector.broadcast %cst_12 : f32 to vector<8x128xf32>
    %22 = arith.addf %21, %20 : vector<8x128xf32>
    %23 = arith.divf %21, %22 : vector<8x128xf32>
    %24 = math.tanh %18 : vector<8x128xf32>
    %25 = vector.extract_strided_slice %23 {offsets = [0, 0], sizes = [8, 32], strides = [1, 1]} : vector<8x128xf32> to vector<8x32xf32>
    %26 = vector.extract_strided_slice %23 {offsets = [0, 32], sizes = [8, 32], strides = [1, 1]} : vector<8x128xf32> to vector<8x32xf32>
    %27 = vector.extract_strided_slice %24 {offsets = [0, 64], sizes = [8, 32], strides = [1, 1]} : vector<8x128xf32> to vector<8x32xf32>
    %28 = vector.extract_strided_slice %23 {offsets = [0, 96], sizes = [8, 32], strides = [1, 1]} : vector<8x128xf32> to vector<8x32xf32>
    %29 = arith.mulf %26, %12 : vector<8x32xf32>
    %30 = arith.mulf %25, %27 : vector<8x32xf32>
    %31 = arith.addf %29, %30 : vector<8x32xf32>
    %32 = math.tanh %31 : vector<8x32xf32>
    %33 = arith.mulf %28, %32 : vector<8x32xf32>
    %34 = arith.addf %33, %10 : vector<8x32xf32>
    %35 = arith.truncf %34 : vector<8x32xf32> to vector<8x32xbf16>
    %cst_13 = arith.constant dense<0.000000e+00> : vector<8x128xf32>
    %36 = tpu.matmul %35, %2, %cst_13 {dimension_numbers = #tpu.dot_dimension_numbers<[1], [0], [0], [1], [0, 0, 1, 1], [], []>} : vector<8x32xbf16>, vector<32x128xbf16>, vector<8x128xf32> -> vector<8x128xf32>
    %37 = arith.truncf %13 : vector<8x32xf32> to vector<8x32xbf16>
    %cst_14 = arith.constant dense<0.000000e+00> : vector<8x128xf32>
    %38 = tpu.matmul %37, %3, %cst_14 {dimension_numbers = #tpu.dot_dimension_numbers<[1], [0], [0], [1], [0, 0, 1, 1], [], []>} : vector<8x32xbf16>, vector<32x128xbf16>, vector<8x128xf32> -> vector<8x128xf32>
    %39 = arith.addf %36, %38 : vector<8x128xf32>
    %40 = arith.negf %39 : vector<8x128xf32>
    %41 = math.exp %40 : vector<8x128xf32>
    %cst_15 = arith.constant 1.000000e+00 : f32
    %42 = vector.broadcast %cst_15 : f32 to vector<8x128xf32>
    %43 = arith.addf %42, %41 : vector<8x128xf32>
    %44 = arith.divf %42, %43 : vector<8x128xf32>
    %45 = math.tanh %39 : vector<8x128xf32>
    %46 = vector.extract_strided_slice %44 {offsets = [0, 0], sizes = [8, 32], strides = [1, 1]} : vector<8x128xf32> to vector<8x32xf32>
    %47 = vector.extract_strided_slice %44 {offsets = [0, 32], sizes = [8, 32], strides = [1, 1]} : vector<8x128xf32> to vector<8x32xf32>
    %48 = vector.extract_strided_slice %45 {offsets = [0, 64], sizes = [8, 32], strides = [1, 1]} : vector<8x128xf32> to vector<8x32xf32>
    %49 = vector.extract_strided_slice %44 {offsets = [0, 96], sizes = [8, 32], strides = [1, 1]} : vector<8x128xf32> to vector<8x32xf32>
    %50 = arith.mulf %47, %14 : vector<8x32xf32>
    %51 = arith.mulf %46, %48 : vector<8x32xf32>
    %52 = arith.addf %50, %51 : vector<8x32xf32>
    %53 = math.tanh %52 : vector<8x32xf32>
    %54 = arith.mulf %49, %53 : vector<8x32xf32>
    %55 = vector.extract_strided_slice %5 {offsets = [8, 0], sizes = [8, 128], strides = [1, 1]} : vector<64x128xf32> to vector<8x128xf32>
    %56 = arith.truncf %33 : vector<8x32xf32> to vector<8x32xbf16>
    %cst_16 = arith.constant dense<0.000000e+00> : vector<8x128xf32>
    %57 = tpu.matmul %56, %1, %cst_16 {dimension_numbers = #tpu.dot_dimension_numbers<[1], [0], [0], [1], [0, 0, 1, 1], [], []>} : vector<8x32xbf16>, vector<32x128xbf16>, vector<8x128xf32> -> vector<8x128xf32>
    %58 = arith.addf %55, %57 : vector<8x128xf32>
    %59 = arith.negf %58 : vector<8x128xf32>
    %60 = math.exp %59 : vector<8x128xf32>
    %cst_17 = arith.constant 1.000000e+00 : f32
    %61 = vector.broadcast %cst_17 : f32 to vector<8x128xf32>
    %62 = arith.addf %61, %60 : vector<8x128xf32>
    %63 = arith.divf %61, %62 : vector<8x128xf32>
    %64 = math.tanh %58 : vector<8x128xf32>
    %65 = vector.extract_strided_slice %63 {offsets = [0, 0], sizes = [8, 32], strides = [1, 1]} : vector<8x128xf32> to vector<8x32xf32>
    %66 = vector.extract_strided_slice %63 {offsets = [0, 32], sizes = [8, 32], strides = [1, 1]} : vector<8x128xf32> to vector<8x32xf32>
    %67 = vector.extract_strided_slice %64 {offsets = [0, 64], sizes = [8, 32], strides = [1, 1]} : vector<8x128xf32> to vector<8x32xf32>
    %68 = vector.extract_strided_slice %63 {offsets = [0, 96], sizes = [8, 32], strides = [1, 1]} : vector<8x128xf32> to vector<8x32xf32>
    %69 = arith.mulf %66, %31 : vector<8x32xf32>
    %70 = arith.mulf %65, %67 : vector<8x32xf32>
    %71 = arith.addf %69, %70 : vector<8x32xf32>
    %72 = math.tanh %71 : vector<8x32xf32>
    %73 = arith.mulf %68, %72 : vector<8x32xf32>
    %74 = arith.addf %73, %10 : vector<8x32xf32>
    %75 = arith.truncf %74 : vector<8x32xf32> to vector<8x32xbf16>
    %cst_18 = arith.constant dense<0.000000e+00> : vector<8x128xf32>
    %76 = tpu.matmul %75, %2, %cst_18 {dimension_numbers = #tpu.dot_dimension_numbers<[1], [0], [0], [1], [0, 0, 1, 1], [], []>} : vector<8x32xbf16>, vector<32x128xbf16>, vector<8x128xf32> -> vector<8x128xf32>
    %77 = arith.truncf %54 : vector<8x32xf32> to vector<8x32xbf16>
    %cst_19 = arith.constant dense<0.000000e+00> : vector<8x128xf32>
    %78 = tpu.matmul %77, %3, %cst_19 {dimension_numbers = #tpu.dot_dimension_numbers<[1], [0], [0], [1], [0, 0, 1, 1], [], []>} : vector<8x32xbf16>, vector<32x128xbf16>, vector<8x128xf32> -> vector<8x128xf32>
    %79 = arith.addf %76, %78 : vector<8x128xf32>
    %80 = arith.negf %79 : vector<8x128xf32>
    %81 = math.exp %80 : vector<8x128xf32>
    %cst_20 = arith.constant 1.000000e+00 : f32
    %82 = vector.broadcast %cst_20 : f32 to vector<8x128xf32>
    %83 = arith.addf %82, %81 : vector<8x128xf32>
    %84 = arith.divf %82, %83 : vector<8x128xf32>
    %85 = math.tanh %79 : vector<8x128xf32>
    %86 = vector.extract_strided_slice %84 {offsets = [0, 0], sizes = [8, 32], strides = [1, 1]} : vector<8x128xf32> to vector<8x32xf32>
    %87 = vector.extract_strided_slice %84 {offsets = [0, 32], sizes = [8, 32], strides = [1, 1]} : vector<8x128xf32> to vector<8x32xf32>
    %88 = vector.extract_strided_slice %85 {offsets = [0, 64], sizes = [8, 32], strides = [1, 1]} : vector<8x128xf32> to vector<8x32xf32>
    %89 = vector.extract_strided_slice %84 {offsets = [0, 96], sizes = [8, 32], strides = [1, 1]} : vector<8x128xf32> to vector<8x32xf32>
    %90 = arith.mulf %87, %52 : vector<8x32xf32>
    %91 = arith.mulf %86, %88 : vector<8x32xf32>
    %92 = arith.addf %90, %91 : vector<8x32xf32>
    %93 = math.tanh %92 : vector<8x32xf32>
    %94 = arith.mulf %89, %93 : vector<8x32xf32>
    %95 = vector.extract_strided_slice %5 {offsets = [16, 0], sizes = [8, 128], strides = [1, 1]} : vector<64x128xf32> to vector<8x128xf32>
    %96 = arith.truncf %73 : vector<8x32xf32> to vector<8x32xbf16>
    %cst_21 = arith.constant dense<0.000000e+00> : vector<8x128xf32>
    %97 = tpu.matmul %96, %1, %cst_21 {dimension_numbers = #tpu.dot_dimension_numbers<[1], [0], [0], [1], [0, 0, 1, 1], [], []>} : vector<8x32xbf16>, vector<32x128xbf16>, vector<8x128xf32> -> vector<8x128xf32>
    %98 = arith.addf %95, %97 : vector<8x128xf32>
    %99 = arith.negf %98 : vector<8x128xf32>
    %100 = math.exp %99 : vector<8x128xf32>
    %cst_22 = arith.constant 1.000000e+00 : f32
    %101 = vector.broadcast %cst_22 : f32 to vector<8x128xf32>
    %102 = arith.addf %101, %100 : vector<8x128xf32>
    %103 = arith.divf %101, %102 : vector<8x128xf32>
    %104 = math.tanh %98 : vector<8x128xf32>
    %105 = vector.extract_strided_slice %103 {offsets = [0, 0], sizes = [8, 32], strides = [1, 1]} : vector<8x128xf32> to vector<8x32xf32>
    %106 = vector.extract_strided_slice %103 {offsets = [0, 32], sizes = [8, 32], strides = [1, 1]} : vector<8x128xf32> to vector<8x32xf32>
    %107 = vector.extract_strided_slice %104 {offsets = [0, 64], sizes = [8, 32], strides = [1, 1]} : vector<8x128xf32> to vector<8x32xf32>
    %108 = vector.extract_strided_slice %103 {offsets = [0, 96], sizes = [8, 32], strides = [1, 1]} : vector<8x128xf32> to vector<8x32xf32>
    %109 = arith.mulf %106, %71 : vector<8x32xf32>
    %110 = arith.mulf %105, %107 : vector<8x32xf32>
    %111 = arith.addf %109, %110 : vector<8x32xf32>
    %112 = math.tanh %111 : vector<8x32xf32>
    %113 = arith.mulf %108, %112 : vector<8x32xf32>
    %114 = arith.addf %113, %10 : vector<8x32xf32>
    %115 = arith.truncf %114 : vector<8x32xf32> to vector<8x32xbf16>
    %cst_23 = arith.constant dense<0.000000e+00> : vector<8x128xf32>
    %116 = tpu.matmul %115, %2, %cst_23 {dimension_numbers = #tpu.dot_dimension_numbers<[1], [0], [0], [1], [0, 0, 1, 1], [], []>} : vector<8x32xbf16>, vector<32x128xbf16>, vector<8x128xf32> -> vector<8x128xf32>
    %117 = arith.truncf %94 : vector<8x32xf32> to vector<8x32xbf16>
    %cst_24 = arith.constant dense<0.000000e+00> : vector<8x128xf32>
    %118 = tpu.matmul %117, %3, %cst_24 {dimension_numbers = #tpu.dot_dimension_numbers<[1], [0], [0], [1], [0, 0, 1, 1], [], []>} : vector<8x32xbf16>, vector<32x128xbf16>, vector<8x128xf32> -> vector<8x128xf32>
    %119 = arith.addf %116, %118 : vector<8x128xf32>
    %120 = arith.negf %119 : vector<8x128xf32>
    %121 = math.exp %120 : vector<8x128xf32>
    %cst_25 = arith.constant 1.000000e+00 : f32
    %122 = vector.broadcast %cst_25 : f32 to vector<8x128xf32>
    %123 = arith.addf %122, %121 : vector<8x128xf32>
    %124 = arith.divf %122, %123 : vector<8x128xf32>
    %125 = math.tanh %119 : vector<8x128xf32>
    %126 = vector.extract_strided_slice %124 {offsets = [0, 0], sizes = [8, 32], strides = [1, 1]} : vector<8x128xf32> to vector<8x32xf32>
    %127 = vector.extract_strided_slice %124 {offsets = [0, 32], sizes = [8, 32], strides = [1, 1]} : vector<8x128xf32> to vector<8x32xf32>
    %128 = vector.extract_strided_slice %125 {offsets = [0, 64], sizes = [8, 32], strides = [1, 1]} : vector<8x128xf32> to vector<8x32xf32>
    %129 = vector.extract_strided_slice %124 {offsets = [0, 96], sizes = [8, 32], strides = [1, 1]} : vector<8x128xf32> to vector<8x32xf32>
    %130 = arith.mulf %127, %92 : vector<8x32xf32>
    %131 = arith.mulf %126, %128 : vector<8x32xf32>
    %132 = arith.addf %130, %131 : vector<8x32xf32>
    %133 = math.tanh %132 : vector<8x32xf32>
    %134 = arith.mulf %129, %133 : vector<8x32xf32>
    %135 = vector.extract_strided_slice %5 {offsets = [24, 0], sizes = [8, 128], strides = [1, 1]} : vector<64x128xf32> to vector<8x128xf32>
    %136 = arith.truncf %113 : vector<8x32xf32> to vector<8x32xbf16>
    %cst_26 = arith.constant dense<0.000000e+00> : vector<8x128xf32>
    %137 = tpu.matmul %136, %1, %cst_26 {dimension_numbers = #tpu.dot_dimension_numbers<[1], [0], [0], [1], [0, 0, 1, 1], [], []>} : vector<8x32xbf16>, vector<32x128xbf16>, vector<8x128xf32> -> vector<8x128xf32>
    %138 = arith.addf %135, %137 : vector<8x128xf32>
    %139 = arith.negf %138 : vector<8x128xf32>
    %140 = math.exp %139 : vector<8x128xf32>
    %cst_27 = arith.constant 1.000000e+00 : f32
    %141 = vector.broadcast %cst_27 : f32 to vector<8x128xf32>
    %142 = arith.addf %141, %140 : vector<8x128xf32>
    %143 = arith.divf %141, %142 : vector<8x128xf32>
    %144 = math.tanh %138 : vector<8x128xf32>
    %145 = vector.extract_strided_slice %143 {offsets = [0, 0], sizes = [8, 32], strides = [1, 1]} : vector<8x128xf32> to vector<8x32xf32>
    %146 = vector.extract_strided_slice %143 {offsets = [0, 32], sizes = [8, 32], strides = [1, 1]} : vector<8x128xf32> to vector<8x32xf32>
    %147 = vector.extract_strided_slice %144 {offsets = [0, 64], sizes = [8, 32], strides = [1, 1]} : vector<8x128xf32> to vector<8x32xf32>
    %148 = vector.extract_strided_slice %143 {offsets = [0, 96], sizes = [8, 32], strides = [1, 1]} : vector<8x128xf32> to vector<8x32xf32>
    %149 = arith.mulf %146, %111 : vector<8x32xf32>
    %150 = arith.mulf %145, %147 : vector<8x32xf32>
    %151 = arith.addf %149, %150 : vector<8x32xf32>
    %152 = math.tanh %151 : vector<8x32xf32>
    %153 = arith.mulf %148, %152 : vector<8x32xf32>
    %154 = arith.addf %153, %10 : vector<8x32xf32>
    %155 = arith.truncf %154 : vector<8x32xf32> to vector<8x32xbf16>
    %cst_28 = arith.constant dense<0.000000e+00> : vector<8x128xf32>
    %156 = tpu.matmul %155, %2, %cst_28 {dimension_numbers = #tpu.dot_dimension_numbers<[1], [0], [0], [1], [0, 0, 1, 1], [], []>} : vector<8x32xbf16>, vector<32x128xbf16>, vector<8x128xf32> -> vector<8x128xf32>
    %157 = arith.truncf %134 : vector<8x32xf32> to vector<8x32xbf16>
    %cst_29 = arith.constant dense<0.000000e+00> : vector<8x128xf32>
    %158 = tpu.matmul %157, %3, %cst_29 {dimension_numbers = #tpu.dot_dimension_numbers<[1], [0], [0], [1], [0, 0, 1, 1], [], []>} : vector<8x32xbf16>, vector<32x128xbf16>, vector<8x128xf32> -> vector<8x128xf32>
    %159 = arith.addf %156, %158 : vector<8x128xf32>
    %160 = arith.negf %159 : vector<8x128xf32>
    %161 = math.exp %160 : vector<8x128xf32>
    %cst_30 = arith.constant 1.000000e+00 : f32
    %162 = vector.broadcast %cst_30 : f32 to vector<8x128xf32>
    %163 = arith.addf %162, %161 : vector<8x128xf32>
    %164 = arith.divf %162, %163 : vector<8x128xf32>
    %165 = math.tanh %159 : vector<8x128xf32>
    %166 = vector.extract_strided_slice %164 {offsets = [0, 0], sizes = [8, 32], strides = [1, 1]} : vector<8x128xf32> to vector<8x32xf32>
    %167 = vector.extract_strided_slice %164 {offsets = [0, 32], sizes = [8, 32], strides = [1, 1]} : vector<8x128xf32> to vector<8x32xf32>
    %168 = vector.extract_strided_slice %165 {offsets = [0, 64], sizes = [8, 32], strides = [1, 1]} : vector<8x128xf32> to vector<8x32xf32>
    %169 = vector.extract_strided_slice %164 {offsets = [0, 96], sizes = [8, 32], strides = [1, 1]} : vector<8x128xf32> to vector<8x32xf32>
    %170 = arith.mulf %167, %132 : vector<8x32xf32>
    %171 = arith.mulf %166, %168 : vector<8x32xf32>
    %172 = arith.addf %170, %171 : vector<8x32xf32>
    %173 = math.tanh %172 : vector<8x32xf32>
    %174 = arith.mulf %169, %173 : vector<8x32xf32>
    %175 = vector.extract_strided_slice %5 {offsets = [32, 0], sizes = [8, 128], strides = [1, 1]} : vector<64x128xf32> to vector<8x128xf32>
    %176 = arith.truncf %153 : vector<8x32xf32> to vector<8x32xbf16>
    %cst_31 = arith.constant dense<0.000000e+00> : vector<8x128xf32>
    %177 = tpu.matmul %176, %1, %cst_31 {dimension_numbers = #tpu.dot_dimension_numbers<[1], [0], [0], [1], [0, 0, 1, 1], [], []>} : vector<8x32xbf16>, vector<32x128xbf16>, vector<8x128xf32> -> vector<8x128xf32>
    %178 = arith.addf %175, %177 : vector<8x128xf32>
    %179 = arith.negf %178 : vector<8x128xf32>
    %180 = math.exp %179 : vector<8x128xf32>
    %cst_32 = arith.constant 1.000000e+00 : f32
    %181 = vector.broadcast %cst_32 : f32 to vector<8x128xf32>
    %182 = arith.addf %181, %180 : vector<8x128xf32>
    %183 = arith.divf %181, %182 : vector<8x128xf32>
    %184 = math.tanh %178 : vector<8x128xf32>
    %185 = vector.extract_strided_slice %183 {offsets = [0, 0], sizes = [8, 32], strides = [1, 1]} : vector<8x128xf32> to vector<8x32xf32>
    %186 = vector.extract_strided_slice %183 {offsets = [0, 32], sizes = [8, 32], strides = [1, 1]} : vector<8x128xf32> to vector<8x32xf32>
    %187 = vector.extract_strided_slice %184 {offsets = [0, 64], sizes = [8, 32], strides = [1, 1]} : vector<8x128xf32> to vector<8x32xf32>
    %188 = vector.extract_strided_slice %183 {offsets = [0, 96], sizes = [8, 32], strides = [1, 1]} : vector<8x128xf32> to vector<8x32xf32>
    %189 = arith.mulf %186, %151 : vector<8x32xf32>
    %190 = arith.mulf %185, %187 : vector<8x32xf32>
    %191 = arith.addf %189, %190 : vector<8x32xf32>
    %192 = math.tanh %191 : vector<8x32xf32>
    %193 = arith.mulf %188, %192 : vector<8x32xf32>
    %194 = arith.addf %193, %10 : vector<8x32xf32>
    %195 = arith.truncf %194 : vector<8x32xf32> to vector<8x32xbf16>
    %cst_33 = arith.constant dense<0.000000e+00> : vector<8x128xf32>
    %196 = tpu.matmul %195, %2, %cst_33 {dimension_numbers = #tpu.dot_dimension_numbers<[1], [0], [0], [1], [0, 0, 1, 1], [], []>} : vector<8x32xbf16>, vector<32x128xbf16>, vector<8x128xf32> -> vector<8x128xf32>
    %197 = arith.truncf %174 : vector<8x32xf32> to vector<8x32xbf16>
    %cst_34 = arith.constant dense<0.000000e+00> : vector<8x128xf32>
    %198 = tpu.matmul %197, %3, %cst_34 {dimension_numbers = #tpu.dot_dimension_numbers<[1], [0], [0], [1], [0, 0, 1, 1], [], []>} : vector<8x32xbf16>, vector<32x128xbf16>, vector<8x128xf32> -> vector<8x128xf32>
    %199 = arith.addf %196, %198 : vector<8x128xf32>
    %200 = arith.negf %199 : vector<8x128xf32>
    %201 = math.exp %200 : vector<8x128xf32>
    %cst_35 = arith.constant 1.000000e+00 : f32
    %202 = vector.broadcast %cst_35 : f32 to vector<8x128xf32>
    %203 = arith.addf %202, %201 : vector<8x128xf32>
    %204 = arith.divf %202, %203 : vector<8x128xf32>
    %205 = math.tanh %199 : vector<8x128xf32>
    %206 = vector.extract_strided_slice %204 {offsets = [0, 0], sizes = [8, 32], strides = [1, 1]} : vector<8x128xf32> to vector<8x32xf32>
    %207 = vector.extract_strided_slice %204 {offsets = [0, 32], sizes = [8, 32], strides = [1, 1]} : vector<8x128xf32> to vector<8x32xf32>
    %208 = vector.extract_strided_slice %205 {offsets = [0, 64], sizes = [8, 32], strides = [1, 1]} : vector<8x128xf32> to vector<8x32xf32>
    %209 = vector.extract_strided_slice %204 {offsets = [0, 96], sizes = [8, 32], strides = [1, 1]} : vector<8x128xf32> to vector<8x32xf32>
    %210 = arith.mulf %207, %172 : vector<8x32xf32>
    %211 = arith.mulf %206, %208 : vector<8x32xf32>
    %212 = arith.addf %210, %211 : vector<8x32xf32>
    %213 = math.tanh %212 : vector<8x32xf32>
    %214 = arith.mulf %209, %213 : vector<8x32xf32>
    %215 = vector.extract_strided_slice %5 {offsets = [40, 0], sizes = [8, 128], strides = [1, 1]} : vector<64x128xf32> to vector<8x128xf32>
    %216 = arith.truncf %193 : vector<8x32xf32> to vector<8x32xbf16>
    %cst_36 = arith.constant dense<0.000000e+00> : vector<8x128xf32>
    %217 = tpu.matmul %216, %1, %cst_36 {dimension_numbers = #tpu.dot_dimension_numbers<[1], [0], [0], [1], [0, 0, 1, 1], [], []>} : vector<8x32xbf16>, vector<32x128xbf16>, vector<8x128xf32> -> vector<8x128xf32>
    %218 = arith.addf %215, %217 : vector<8x128xf32>
    %219 = arith.negf %218 : vector<8x128xf32>
    %220 = math.exp %219 : vector<8x128xf32>
    %cst_37 = arith.constant 1.000000e+00 : f32
    %221 = vector.broadcast %cst_37 : f32 to vector<8x128xf32>
    %222 = arith.addf %221, %220 : vector<8x128xf32>
    %223 = arith.divf %221, %222 : vector<8x128xf32>
    %224 = math.tanh %218 : vector<8x128xf32>
    %225 = vector.extract_strided_slice %223 {offsets = [0, 0], sizes = [8, 32], strides = [1, 1]} : vector<8x128xf32> to vector<8x32xf32>
    %226 = vector.extract_strided_slice %223 {offsets = [0, 32], sizes = [8, 32], strides = [1, 1]} : vector<8x128xf32> to vector<8x32xf32>
    %227 = vector.extract_strided_slice %224 {offsets = [0, 64], sizes = [8, 32], strides = [1, 1]} : vector<8x128xf32> to vector<8x32xf32>
    %228 = vector.extract_strided_slice %223 {offsets = [0, 96], sizes = [8, 32], strides = [1, 1]} : vector<8x128xf32> to vector<8x32xf32>
    %229 = arith.mulf %226, %191 : vector<8x32xf32>
    %230 = arith.mulf %225, %227 : vector<8x32xf32>
    %231 = arith.addf %229, %230 : vector<8x32xf32>
    %232 = math.tanh %231 : vector<8x32xf32>
    %233 = arith.mulf %228, %232 : vector<8x32xf32>
    %234 = arith.addf %233, %10 : vector<8x32xf32>
    %235 = arith.truncf %234 : vector<8x32xf32> to vector<8x32xbf16>
    %cst_38 = arith.constant dense<0.000000e+00> : vector<8x128xf32>
    %236 = tpu.matmul %235, %2, %cst_38 {dimension_numbers = #tpu.dot_dimension_numbers<[1], [0], [0], [1], [0, 0, 1, 1], [], []>} : vector<8x32xbf16>, vector<32x128xbf16>, vector<8x128xf32> -> vector<8x128xf32>
    %237 = arith.truncf %214 : vector<8x32xf32> to vector<8x32xbf16>
    %cst_39 = arith.constant dense<0.000000e+00> : vector<8x128xf32>
    %238 = tpu.matmul %237, %3, %cst_39 {dimension_numbers = #tpu.dot_dimension_numbers<[1], [0], [0], [1], [0, 0, 1, 1], [], []>} : vector<8x32xbf16>, vector<32x128xbf16>, vector<8x128xf32> -> vector<8x128xf32>
    %239 = arith.addf %236, %238 : vector<8x128xf32>
    %240 = arith.negf %239 : vector<8x128xf32>
    %241 = math.exp %240 : vector<8x128xf32>
    %cst_40 = arith.constant 1.000000e+00 : f32
    %242 = vector.broadcast %cst_40 : f32 to vector<8x128xf32>
    %243 = arith.addf %242, %241 : vector<8x128xf32>
    %244 = arith.divf %242, %243 : vector<8x128xf32>
    %245 = math.tanh %239 : vector<8x128xf32>
    %246 = vector.extract_strided_slice %244 {offsets = [0, 0], sizes = [8, 32], strides = [1, 1]} : vector<8x128xf32> to vector<8x32xf32>
    %247 = vector.extract_strided_slice %244 {offsets = [0, 32], sizes = [8, 32], strides = [1, 1]} : vector<8x128xf32> to vector<8x32xf32>
    %248 = vector.extract_strided_slice %245 {offsets = [0, 64], sizes = [8, 32], strides = [1, 1]} : vector<8x128xf32> to vector<8x32xf32>
    %249 = vector.extract_strided_slice %244 {offsets = [0, 96], sizes = [8, 32], strides = [1, 1]} : vector<8x128xf32> to vector<8x32xf32>
    %250 = arith.mulf %247, %212 : vector<8x32xf32>
    %251 = arith.mulf %246, %248 : vector<8x32xf32>
    %252 = arith.addf %250, %251 : vector<8x32xf32>
    %253 = math.tanh %252 : vector<8x32xf32>
    %254 = arith.mulf %249, %253 : vector<8x32xf32>
    %255 = vector.extract_strided_slice %5 {offsets = [48, 0], sizes = [8, 128], strides = [1, 1]} : vector<64x128xf32> to vector<8x128xf32>
    %256 = arith.truncf %233 : vector<8x32xf32> to vector<8x32xbf16>
    %cst_41 = arith.constant dense<0.000000e+00> : vector<8x128xf32>
    %257 = tpu.matmul %256, %1, %cst_41 {dimension_numbers = #tpu.dot_dimension_numbers<[1], [0], [0], [1], [0, 0, 1, 1], [], []>} : vector<8x32xbf16>, vector<32x128xbf16>, vector<8x128xf32> -> vector<8x128xf32>
    %258 = arith.addf %255, %257 : vector<8x128xf32>
    %259 = arith.negf %258 : vector<8x128xf32>
    %260 = math.exp %259 : vector<8x128xf32>
    %cst_42 = arith.constant 1.000000e+00 : f32
    %261 = vector.broadcast %cst_42 : f32 to vector<8x128xf32>
    %262 = arith.addf %261, %260 : vector<8x128xf32>
    %263 = arith.divf %261, %262 : vector<8x128xf32>
    %264 = math.tanh %258 : vector<8x128xf32>
    %265 = vector.extract_strided_slice %263 {offsets = [0, 0], sizes = [8, 32], strides = [1, 1]} : vector<8x128xf32> to vector<8x32xf32>
    %266 = vector.extract_strided_slice %263 {offsets = [0, 32], sizes = [8, 32], strides = [1, 1]} : vector<8x128xf32> to vector<8x32xf32>
    %267 = vector.extract_strided_slice %264 {offsets = [0, 64], sizes = [8, 32], strides = [1, 1]} : vector<8x128xf32> to vector<8x32xf32>
    %268 = vector.extract_strided_slice %263 {offsets = [0, 96], sizes = [8, 32], strides = [1, 1]} : vector<8x128xf32> to vector<8x32xf32>
    %269 = arith.mulf %266, %231 : vector<8x32xf32>
    %270 = arith.mulf %265, %267 : vector<8x32xf32>
    %271 = arith.addf %269, %270 : vector<8x32xf32>
    %272 = math.tanh %271 : vector<8x32xf32>
    %273 = arith.mulf %268, %272 : vector<8x32xf32>
    %274 = arith.addf %273, %10 : vector<8x32xf32>
    %275 = arith.truncf %274 : vector<8x32xf32> to vector<8x32xbf16>
    %cst_43 = arith.constant dense<0.000000e+00> : vector<8x128xf32>
    %276 = tpu.matmul %275, %2, %cst_43 {dimension_numbers = #tpu.dot_dimension_numbers<[1], [0], [0], [1], [0, 0, 1, 1], [], []>} : vector<8x32xbf16>, vector<32x128xbf16>, vector<8x128xf32> -> vector<8x128xf32>
    %277 = arith.truncf %254 : vector<8x32xf32> to vector<8x32xbf16>
    %cst_44 = arith.constant dense<0.000000e+00> : vector<8x128xf32>
    %278 = tpu.matmul %277, %3, %cst_44 {dimension_numbers = #tpu.dot_dimension_numbers<[1], [0], [0], [1], [0, 0, 1, 1], [], []>} : vector<8x32xbf16>, vector<32x128xbf16>, vector<8x128xf32> -> vector<8x128xf32>
    %279 = arith.addf %276, %278 : vector<8x128xf32>
    %280 = arith.negf %279 : vector<8x128xf32>
    %281 = math.exp %280 : vector<8x128xf32>
    %cst_45 = arith.constant 1.000000e+00 : f32
    %282 = vector.broadcast %cst_45 : f32 to vector<8x128xf32>
    %283 = arith.addf %282, %281 : vector<8x128xf32>
    %284 = arith.divf %282, %283 : vector<8x128xf32>
    %285 = math.tanh %279 : vector<8x128xf32>
    %286 = vector.extract_strided_slice %284 {offsets = [0, 0], sizes = [8, 32], strides = [1, 1]} : vector<8x128xf32> to vector<8x32xf32>
    %287 = vector.extract_strided_slice %284 {offsets = [0, 32], sizes = [8, 32], strides = [1, 1]} : vector<8x128xf32> to vector<8x32xf32>
    %288 = vector.extract_strided_slice %285 {offsets = [0, 64], sizes = [8, 32], strides = [1, 1]} : vector<8x128xf32> to vector<8x32xf32>
    %289 = vector.extract_strided_slice %284 {offsets = [0, 96], sizes = [8, 32], strides = [1, 1]} : vector<8x128xf32> to vector<8x32xf32>
    %290 = arith.mulf %287, %252 : vector<8x32xf32>
    %291 = arith.mulf %286, %288 : vector<8x32xf32>
    %292 = arith.addf %290, %291 : vector<8x32xf32>
    %293 = math.tanh %292 : vector<8x32xf32>
    %294 = arith.mulf %289, %293 : vector<8x32xf32>
    %295 = vector.extract_strided_slice %5 {offsets = [56, 0], sizes = [8, 128], strides = [1, 1]} : vector<64x128xf32> to vector<8x128xf32>
    %296 = arith.truncf %273 : vector<8x32xf32> to vector<8x32xbf16>
    %cst_46 = arith.constant dense<0.000000e+00> : vector<8x128xf32>
    %297 = tpu.matmul %296, %1, %cst_46 {dimension_numbers = #tpu.dot_dimension_numbers<[1], [0], [0], [1], [0, 0, 1, 1], [], []>} : vector<8x32xbf16>, vector<32x128xbf16>, vector<8x128xf32> -> vector<8x128xf32>
    %298 = arith.addf %295, %297 : vector<8x128xf32>
    %299 = arith.negf %298 : vector<8x128xf32>
    %300 = math.exp %299 : vector<8x128xf32>
    %cst_47 = arith.constant 1.000000e+00 : f32
    %301 = vector.broadcast %cst_47 : f32 to vector<8x128xf32>
    %302 = arith.addf %301, %300 : vector<8x128xf32>
    %303 = arith.divf %301, %302 : vector<8x128xf32>
    %304 = math.tanh %298 : vector<8x128xf32>
    %305 = vector.extract_strided_slice %303 {offsets = [0, 0], sizes = [8, 32], strides = [1, 1]} : vector<8x128xf32> to vector<8x32xf32>
    %306 = vector.extract_strided_slice %303 {offsets = [0, 32], sizes = [8, 32], strides = [1, 1]} : vector<8x128xf32> to vector<8x32xf32>
    %307 = vector.extract_strided_slice %304 {offsets = [0, 64], sizes = [8, 32], strides = [1, 1]} : vector<8x128xf32> to vector<8x32xf32>
    %308 = vector.extract_strided_slice %303 {offsets = [0, 96], sizes = [8, 32], strides = [1, 1]} : vector<8x128xf32> to vector<8x32xf32>
    %309 = arith.mulf %306, %271 : vector<8x32xf32>
    %310 = arith.mulf %305, %307 : vector<8x32xf32>
    %311 = arith.addf %309, %310 : vector<8x32xf32>
    %312 = math.tanh %311 : vector<8x32xf32>
    %313 = arith.mulf %308, %312 : vector<8x32xf32>
    %314 = arith.addf %313, %10 : vector<8x32xf32>
    %315 = arith.truncf %314 : vector<8x32xf32> to vector<8x32xbf16>
    %cst_48 = arith.constant dense<0.000000e+00> : vector<8x128xf32>
    %316 = tpu.matmul %315, %2, %cst_48 {dimension_numbers = #tpu.dot_dimension_numbers<[1], [0], [0], [1], [0, 0, 1, 1], [], []>} : vector<8x32xbf16>, vector<32x128xbf16>, vector<8x128xf32> -> vector<8x128xf32>
    %317 = arith.truncf %294 : vector<8x32xf32> to vector<8x32xbf16>
    %cst_49 = arith.constant dense<0.000000e+00> : vector<8x128xf32>
    %318 = tpu.matmul %317, %3, %cst_49 {dimension_numbers = #tpu.dot_dimension_numbers<[1], [0], [0], [1], [0, 0, 1, 1], [], []>} : vector<8x32xbf16>, vector<32x128xbf16>, vector<8x128xf32> -> vector<8x128xf32>
    %319 = arith.addf %316, %318 : vector<8x128xf32>
    %320 = arith.negf %319 : vector<8x128xf32>
    %321 = math.exp %320 : vector<8x128xf32>
    %cst_50 = arith.constant 1.000000e+00 : f32
    %322 = vector.broadcast %cst_50 : f32 to vector<8x128xf32>
    %323 = arith.addf %322, %321 : vector<8x128xf32>
    %324 = arith.divf %322, %323 : vector<8x128xf32>
    %325 = math.tanh %319 : vector<8x128xf32>
    %326 = vector.extract_strided_slice %324 {offsets = [0, 0], sizes = [8, 32], strides = [1, 1]} : vector<8x128xf32> to vector<8x32xf32>
    %327 = vector.extract_strided_slice %324 {offsets = [0, 32], sizes = [8, 32], strides = [1, 1]} : vector<8x128xf32> to vector<8x32xf32>
    %328 = vector.extract_strided_slice %325 {offsets = [0, 64], sizes = [8, 32], strides = [1, 1]} : vector<8x128xf32> to vector<8x32xf32>
    %329 = vector.extract_strided_slice %324 {offsets = [0, 96], sizes = [8, 32], strides = [1, 1]} : vector<8x128xf32> to vector<8x32xf32>
    %330 = arith.mulf %327, %292 : vector<8x32xf32>
    %331 = arith.mulf %326, %328 : vector<8x32xf32>
    %332 = arith.addf %330, %331 : vector<8x32xf32>
    %333 = math.tanh %332 : vector<8x32xf32>
    %334 = arith.mulf %329, %333 : vector<8x32xf32>
    %c0_51 = arith.constant 0 : index
    %c0_52 = arith.constant 0 : index
    %335 = vector.load %arg3[%c0_51, %c0_52] : memref<2x128xf32, #tpu.memory_space<vmem>>, vector<1x32xf32>
    %c1 = arith.constant 1 : index
    %c0_53 = arith.constant 0 : index
    %336 = vector.load %arg3[%c1, %c0_53] : memref<2x128xf32, #tpu.memory_space<vmem>>, vector<1x1xf32>
    %337 = vector.broadcast %335 : vector<1x32xf32> to vector<8x32xf32>
    %338 = arith.mulf %334, %337 : vector<8x32xf32>
    %cst_54 = arith.constant dense<0.000000e+00> : vector<8xf32>
    %339 = vector.multi_reduction <add>, %338, %cst_54 [1] : vector<8x32xf32> to vector<8xf32>
    %340 = vector.shape_cast %339 : vector<8xf32> to vector<8x1xf32>
    %341 = vector.broadcast %336 : vector<1x1xf32> to vector<8x1xf32>
    %342 = arith.addf %340, %341 : vector<8x1xf32>
    %343 = vector.extract_strided_slice %342 {offsets = [0, 0], sizes = [2, 1], strides = [1, 1]} : vector<8x1xf32> to vector<2x1xf32>
    %c0_55 = arith.constant 0 : index
    %c0_56 = arith.constant 0 : index
    %344 = vector.load %arg4[%c0_55, %c0_56] : memref<2x1xf32, #tpu.memory_space<vmem>>, vector<2x1xf32>
    tpu.vector_store %arg4[%c0_55, %c0_56], %343 {strides = array<i32>} : memref<2x1xf32, #tpu.memory_space<vmem>>, vector<2x1xf32>,
    return
  }
}

</mosaic_0001>

<llo_original>
// kernel: lstm_forward.1
$region0: #{lstm_forward.1}
  #allocation0 [shape = 'u32[]', space=smem, size = 0x4, offset = 0x4, fixed_abs, tag = 'smem constant byte address 0x4 - core index']
  #allocation1 [shape = 'u32[144,128]{1,0:T(1,128)}', space=vmem, size = 0x12000, scoped, tag = 'internal scratch']
  %s0 = inlined_call_operand.vmem [shape: bf16[64,16], index: 0, kind: input, shape index: {}]
  %s1 = inlined_call_operand.vmem [shape: bf16[48,128], index: 1, kind: input, shape index: {}]
  %s2 = inlined_call_operand.vmem [shape: bf16[64,128], index: 2, kind: input, shape index: {}]
  %s3 = inlined_call_operand.vmem [shape: f32[2,128], index: 3, kind: input, shape index: {}]
  %s4 = inlined_call_operand.vmem [shape: f32[2,1], index: 4, kind: output, shape index: {}]
  %s5 = sld [smem:[#allocation0]]
  $region26: #{lstm_forward.1} parent=0
    _
  %s7 = ssub.s32 1, %s5
  %s8 = scalar_select 0, %s7, %s5
  // Predicated region
  $region2: #{lstm_forward.1} parent=0 // pred_check
    _
  $region3: #{lstm_forward.1} parent=0 // pred_check_branch
    %10 = sbr.rel (0) target = $region5
  $region4: #{lstm_forward.1} parent=0 // pred_region
    _
  $region5: #{lstm_forward.1} parent=0 // pred_fallthru
    _
  // Predicated region
  $region6: #{lstm_forward.1} parent=0 // pred_check
    _
  $region7: #{lstm_forward.1} parent=0 // pred_check_branch
    %12 = sbr.rel (0) target = $region9
  $region8: #{lstm_forward.1} parent=0 // pred_region
    _
  $region9: #{lstm_forward.1} parent=0 // pred_fallthru
    _
  // Predicated region
  $region10: #{lstm_forward.1} parent=0 // pred_check
    _
  $region11: #{lstm_forward.1} parent=0 // pred_check_branch
    %14 = sbr.rel (0) target = $region13
  $region12: #{lstm_forward.1} parent=0 // pred_region
    _
  $region13: #{lstm_forward.1} parent=0 // pred_fallthru
    _
  // Predicated region
  $region14: #{lstm_forward.1} parent=0 // pred_check
    _
  $region15: #{lstm_forward.1} parent=0 // pred_check_branch
    %16 = sbr.rel (0) target = $region17
  $region16: #{lstm_forward.1} parent=0 // pred_region
    _
  $region17: #{lstm_forward.1} parent=0 // pred_fallthru
    _
  %v18 = vld [vmem:[%s1] sm:$0xf]
  %v19 = vld [vmem:[%s1 + $0x4] sm:$0xf]
  %v20 = vld [vmem:[%s1 + $0x8] sm:$0xf]
  %v21 = vld [vmem:[%s1 + $0xc] sm:$0xf]
  %v22 = vld [vmem:[%s1 + $0x10] sm:$0xf]
  %v23 = vld [vmem:[%s1 + $0x14] sm:$0xf]
  %v24 = vld [vmem:[%s2] sm:$0xf]
  %v25 = vld [vmem:[%s2 + $0x4] sm:$0xf]
  %v26 = vld [vmem:[%s2 + $0x8] sm:$0xf]
  %v27 = vld [vmem:[%s2 + $0xc] sm:$0xf]
  %v28 = vld [vmem:[%s2 + $0x10] sm:$0xf]
  %v29 = vld [vmem:[%s2 + $0x14] sm:$0xf]
  %v30 = vld [vmem:[%s2 + $0x18] sm:$0xf]
  %v31 = vld [vmem:[%s2 + $0x1c] sm:$0xf]
  %v32 = vld [vmem:[%s0] sm:$0xf]
  %v33 = vld [vmem:[%s0 + $0x4] sm:$0xf]
  %v34 = vld [vmem:[%s0 + $0x8] sm:$0xf]
  %v35 = vld [vmem:[%s0 + $0xc] sm:$0xf]
  %v36 = vld [vmem:[%s0 + $0x10] sm:$0xf]
  %v37 = vld [vmem:[%s0 + $0x14] sm:$0xf]
  %v38 = vld [vmem:[%s0 + $0x18] sm:$0xf]
  %v39 = vld [vmem:[%s0 + $0x1c] sm:$0xf]
  %v48 = vunpack.c.l.b16 %v32
  %v49 = vunpack.c.l.b16 %v33
  %v50 = vunpack.c.l.b16 %v34
  %v51 = vunpack.c.l.b16 %v35
  %v52 = vunpack.c.l.b16 %v36
  %v53 = vunpack.c.l.b16 %v37
  %v54 = vunpack.c.l.b16 %v38
  %v55 = vunpack.c.l.b16 %v39
  %v56 = vpack.c.b16 %v49, %v48
  %v57 = vpack.c.b16 %v51, %v50
  %v58 = vpack.c.b16 %v53, %v52
  %v59 = vpack.c.b16 %v55, %v54
  %v62 = vunpack.c.l.b16 %v18
  %v63 = vunpack.c.l.b16 %v19
  %v64 = vpack.c.b16 %v63, %v62
  %vm66 = vcmask 130048
  %v68 = vsel %vm66, %v56, 0
  %v71 = vsel %vm66, %v57, 0
  %v74 = vsel %vm66, %v58, 0
  %v77 = vsel %vm66, %v59, 0
  %79 = vmatprep.subr.bf16.mxu0 0
  %80 = vmatpush1.bf16.msra.mxu0 0
  %81 = vmatprep.subr.bf16.mxu0 0
  %82 = vmatpush1.bf16.msra.mxu0 0
  %83 = vmatprep.subr.bf16.mxu0 0
  %84 = vmatpush1.bf16.msra.mxu0 0
  %85 = vmatprep.subr.bf16.mxu0 0
  %86 = vmatpush1.bf16.msra.mxu0 0
  %87 = vmatprep.subr.bf16.mxu0 0
  %88 = vmatpush1.bf16.msra.mxu0 0
  %89 = vmatprep.subr.bf16.mxu0 0
  %90 = vmatpush1.bf16.msra.mxu0 0
  %91 = vmatprep.subr.bf16.mxu0 0
  %92 = vmatpush1.bf16.msra.mxu0 0
  %93 = vmatprep.subr.bf16.mxu0 0
  %94 = vmatpush1.bf16.msra.mxu0 %v64
  %95 = vmatprep.subr.bf16.mxu0 0
  %96 = vmatpush2.bf16.msra.mxu0 0
  %97 = vmatprep.subr.bf16.mxu0 0
  %98 = vmatpush2.bf16.msra.mxu0 0
  %99 = vmatprep.subr.bf16.mxu0 0
  %100 = vmatpush2.bf16.msra.mxu0 0
  %101 = vmatprep.subr.bf16.mxu0 0
  %102 = vmatpush2.bf16.msra.mxu0 0
  %103 = vmatprep.subr.bf16.mxu0 0
  %104 = vmatpush2.bf16.msra.mxu0 0
  %105 = vmatprep.subr.bf16.mxu0 0
  %106 = vmatpush2.bf16.msra.mxu0 0
  %107 = vmatprep.subr.bf16.mxu0 0
  %108 = vmatpush2.bf16.msra.mxu0 0
  %109 = vmatprep.subr.bf16.mxu0 0
  %110 = vmatpush2.bf16.msra.mxu0 0
  %111 = vmatprep.mubr.bf16.mxu0 0
  %112 = vmatmul.mubr.bf16.gmra.mxu0 %v68
  %v113 = vpop.f32.mrf.mxu0
  %v114 = vadd.f32 0.0, %v113
  %v115 = vpop.f32.mrf.mxu0
  %v116 = vpop.f32.mrf.mxu0
  %v117 = vadd.f32 0.0, %v116
  %v118 = vpop.f32.mrf.mxu0
  %119 = vmatprep.mubr.bf16.mxu0 0
  %120 = vmatmul.mubr.bf16.gmra.mxu0 %v71
  %v121 = vpop.f32.mrf.mxu0
  %v122 = vadd.f32 0.0, %v121
  %v123 = vpop.f32.mrf.mxu0
  %v124 = vpop.f32.mrf.mxu0
  %v125 = vadd.f32 0.0, %v124
  %v126 = vpop.f32.mrf.mxu0
  %127 = vmatprep.mubr.bf16.mxu0 0
  %128 = vmatmul.mubr.bf16.gmra.mxu0 %v74
  %v129 = vpop.f32.mrf.mxu0
  %v130 = vadd.f32 0.0, %v129
  %v131 = vpop.f32.mrf.mxu0
  %v132 = vpop.f32.mrf.mxu0
  %v133 = vadd.f32 0.0, %v132
  %v134 = vpop.f32.mrf.mxu0
  %135 = vmatprep.mubr.bf16.mxu0 0
  %136 = vmatmul.mubr.bf16.gmra.mxu0 %v77
  %v137 = vpop.f32.mrf.mxu0
  %v138 = vadd.f32 0.0, %v137
  %v139 = vpop.f32.mrf.mxu0
  %v140 = vpop.f32.mrf.mxu0
  %v141 = vadd.f32 0.0, %v140
  %v142 = vpop.f32.mrf.mxu0
  %143 = vdwg.mxu0
  %v144 = vlaneseq
  %v145 = vand.u32 %v144, 127
  %vm146 = vcmp.eq.s32.totalorder %v145, 20
  %v147 = vsel %vm146, 1, 0
  %v148 = vcvt.s32.f32 %v147
  %v153 = vunpack.c.l.b16 %v20
  %v154 = vunpack.c.l.b16 %v21
  %v155 = vunpack.c.l.b16 %v22
  %v156 = vunpack.c.l.b16 %v23
  %v157 = vpack.c.b16 %v154, %v153
  %v158 = vpack.c.b16 %v156, %v155
  %vm161 = vcmask 261120
  %v163 = vsel %vm161, 0, 0
  %165 = vmatprep.subr.bf16.mxu0 0
  %166 = vmatpush1.bf16.msra.mxu0 0
  %167 = vmatprep.subr.bf16.mxu0 0
  %168 = vmatpush1.bf16.msra.mxu0 0
  %169 = vmatprep.subr.bf16.mxu0 0
  %170 = vmatpush1.bf16.msra.mxu0 0
  %171 = vmatprep.subr.bf16.mxu0 0
  %172 = vmatpush1.bf16.msra.mxu0 0
  %173 = vmatprep.subr.bf16.mxu0 0
  %174 = vmatpush1.bf16.msra.mxu0 0
  %175 = vmatprep.subr.bf16.mxu0 0
  %176 = vmatpush1.bf16.msra.mxu0 0
  %177 = vmatprep.subr.bf16.mxu0 0
  %178 = vmatpush1.bf16.msra.mxu0 %v158
  %179 = vmatprep.subr.bf16.mxu0 0
  %180 = vmatpush1.bf16.msra.mxu0 %v157
  %181 = vmatprep.subr.bf16.mxu0 0
  %182 = vmatpush2.bf16.msra.mxu0 0
  %183 = vmatprep.subr.bf16.mxu0 0
  %184 = vmatpush2.bf16.msra.mxu0 0
  %185 = vmatprep.subr.bf16.mxu0 0
  %186 = vmatpush2.bf16.msra.mxu0 0
  %187 = vmatprep.subr.bf16.mxu0 0
  %188 = vmatpush2.bf16.msra.mxu0 0
  %189 = vmatprep.subr.bf16.mxu0 0
  %190 = vmatpush2.bf16.msra.mxu0 0
  %191 = vmatprep.subr.bf16.mxu0 0
  %192 = vmatpush2.bf16.msra.mxu0 0
  %193 = vmatprep.subr.bf16.mxu0 0
  %194 = vmatpush2.bf16.msra.mxu0 0
  %195 = vmatprep.subr.bf16.mxu0 0
  %196 = vmatpush2.bf16.msra.mxu0 0
  %197 = vmatprep.mubr.bf16.mxu0 0
  %198 = vmatmul.mubr.bf16.gmra.mxu0 %v163
  %v199 = vpop.f32.mrf.mxu0
  %v200 = vadd.f32 0.0, %v199
  %v201 = vpop.f32.mrf.mxu0
  %v202 = vpop.f32.mrf.mxu0
  %v203 = vpop.f32.mrf.mxu0
  %204 = vdwg.mxu0
  %v205 = vadd.f32 %v114, %v200
  %v206 = vxor.u32 %v205, 2147483648
  %v207 = vmul.f32 %v206, 1.442695
  %v208 = vpow.pop %v207
  %v209 = vadd.f32 %v208, 1.0
  %v210 = vrcp.pop %v209
  %v211 = vmul.f32 1.0, %v210
  %v212 = vtanh.pop %v205
  %v213 = vmul.f32 %v211, 0.0
  %215 = vrot.lane.b32.xlu0 %v212, 64
  %v216 = vpop.permute.xlu0 %215
  %v218 = vmul.f32 %v211, %v216
  %220 = vrot.lane.b32.xlu0 %v218, 32
  %v221 = vpop.permute.xlu0 %220
  %v223 = vadd.f32 %v213, %v221
  %v224 = vtanh.pop %v223
  %226 = vrot.lane.b32.xlu0 %v224, 64
  %v227 = vpop.permute.xlu0 %226
  %v229 = vmul.f32 %v211, %v227
  %231 = vrot.lane.b32.xlu0 %v148, 96
  %v232 = vpop.permute.xlu0 %231
  %v234 = vadd.f32 %v229, %v232
  %v235 = vpack.c.bf16 %v234, %v234
  %v240 = vunpack.c.l.b16 %v28
  %v241 = vunpack.c.l.b16 %v29
  %v242 = vunpack.c.l.b16 %v30
  %v243 = vunpack.c.l.b16 %v31
  %v244 = vpack.c.b16 %v241, %v240
  %v245 = vpack.c.b16 %v243, %v242
  %248 = vmatprep.subr.bf16.mxu0 0
  %249 = vmatpush1.bf16.msra.mxu0 0
  %250 = vmatprep.subr.bf16.mxu0 0
  %251 = vmatpush1.bf16.msra.mxu0 0
  %252 = vmatprep.subr.bf16.mxu0 0
  %253 = vmatpush1.bf16.msra.mxu0 0
  %254 = vmatprep.subr.bf16.mxu0 0
  %255 = vmatpush1.bf16.msra.mxu0 0
  %256 = vmatprep.subr.bf16.mxu0 0
  %257 = vmatpush1.bf16.msra.mxu0 0
  %258 = vmatprep.subr.bf16.mxu0 0
  %259 = vmatpush1.bf16.msra.mxu0 0
  %260 = vmatprep.subr.bf16.mxu0 0
  %261 = vmatpush1.bf16.msra.mxu0 %v245
  %262 = vmatprep.subr.bf16.mxu0 0
  %263 = vmatpush1.bf16.msra.mxu0 %v244
  %264 = vmatprep.subr.bf16.mxu0 0
  %265 = vmatpush2.bf16.msra.mxu0 0
  %266 = vmatprep.subr.bf16.mxu0 0
  %267 = vmatpush2.bf16.msra.mxu0 0
  %268 = vmatprep.subr.bf16.mxu0 0
  %269 = vmatpush2.bf16.msra.mxu0 0
  %270 = vmatprep.subr.bf16.mxu0 0
  %271 = vmatpush2.bf16.msra.mxu0 0
  %272 = vmatprep.subr.bf16.mxu0 0
  %273 = vmatpush2.bf16.msra.mxu0 0
  %274 = vmatprep.subr.bf16.mxu0 0
  %275 = vmatpush2.bf16.msra.mxu0 0
  %276 = vmatprep.subr.bf16.mxu0 0
  %277 = vmatpush2.bf16.msra.mxu0 0
  %278 = vmatprep.subr.bf16.mxu0 0
  %279 = vmatpush2.bf16.msra.mxu0 0
  %280 = vmatprep.mubr.bf16.mxu0 0
  %281 = vmatmul.mubr.bf16.gmra.mxu0 %v163
  %v282 = vpop.f32.mrf.mxu0
  %v283 = vadd.f32 0.0, %v282
  %v284 = vpop.f32.mrf.mxu0
  %v285 = vpop.f32.mrf.mxu0
  %v286 = vpop.f32.mrf.mxu0
  %287 = vdwg.mxu0
  %289 = vrot.lane.b32.xlu0 %v235, 32
  %v290 = vpop.permute.xlu0 %289
  %v295 = vunpack.c.l.b16 %v24
  %v296 = vunpack.c.l.b16 %v25
  %v297 = vunpack.c.l.b16 %v26
  %v298 = vunpack.c.l.b16 %v27
  %v299 = vpack.c.b16 %v296, %v295
  %v300 = vpack.c.b16 %v298, %v297
  %v304 = vsel %vm161, %v290, 0
  %306 = vmatprep.subr.bf16.mxu0 0
  %307 = vmatpush1.bf16.msra.mxu0 0
  %308 = vmatprep.subr.bf16.mxu0 0
  %309 = vmatpush1.bf16.msra.mxu0 0
  %310 = vmatprep.subr.bf16.mxu0 0
  %311 = vmatpush1.bf16.msra.mxu0 0
  %312 = vmatprep.subr.bf16.mxu0 0
  %313 = vmatpush1.bf16.msra.mxu0 0
  %314 = vmatprep.subr.bf16.mxu0 0
  %315 = vmatpush1.bf16.msra.mxu0 0
  %316 = vmatprep.subr.bf16.mxu0 0
  %317 = vmatpush1.bf16.msra.mxu0 0
  %318 = vmatprep.subr.bf16.mxu0 0
  %319 = vmatpush1.bf16.msra.mxu0 %v300
  %320 = vmatprep.subr.bf16.mxu0 0
  %321 = vmatpush1.bf16.msra.mxu0 %v299
  %322 = vmatprep.subr.bf16.mxu0 0
  %323 = vmatpush2.bf16.msra.mxu0 0
  %324 = vmatprep.subr.bf16.mxu0 0
  %325 = vmatpush2.bf16.msra.mxu0 0
  %326 = vmatprep.subr.bf16.mxu0 0
  %327 = vmatpush2.bf16.msra.mxu0 0
  %328 = vmatprep.subr.bf16.mxu0 0
  %329 = vmatpush2.bf16.msra.mxu0 0
  %330 = vmatprep.subr.bf16.mxu0 0
  %331 = vmatpush2.bf16.msra.mxu0 0
  %332 = vmatprep.subr.bf16.mxu0 0
  %333 = vmatpush2.bf16.msra.mxu0 0
  %334 = vmatprep.subr.bf16.mxu0 0
  %335 = vmatpush2.bf16.msra.mxu0 0
  %336 = vmatprep.subr.bf16.mxu0 0
  %337 = vmatpush2.bf16.msra.mxu0 0
  %338 = vmatprep.mubr.bf16.mxu0 0
  %339 = vmatmul.mubr.bf16.gmra.mxu0 %v304
  %v340 = vpop.f32.mrf.mxu0
  %v341 = vadd.f32 %v283, %v340
  %v342 = vpop.f32.mrf.mxu0
  %v343 = vpop.f32.mrf.mxu0
  %v344 = vpop.f32.mrf.mxu0
  %345 = vdwg.mxu0
  %v346 = vxor.u32 %v341, 2147483648
  %v347 = vmul.f32 %v346, 1.442695
  %v348 = vpow.pop %v347
  %v349 = vadd.f32 %v348, 1.0
  %v350 = vrcp.pop %v349
  %v351 = vmul.f32 1.0, %v350
  %v352 = vtanh.pop %v341
  %v353 = vmul.f32 %v351, 0.0
  %355 = vrot.lane.b32.xlu0 %v352, 64
  %v356 = vpop.permute.xlu0 %355
  %v358 = vmul.f32 %v351, %v356
  %360 = vrot.lane.b32.xlu0 %v358, 32
  %v361 = vpop.permute.xlu0 %360
  %v363 = vadd.f32 %v353, %v361
  %v364 = vtanh.pop %v363
  %366 = vrot.lane.b32.xlu0 %v364, 64
  %v367 = vpop.permute.xlu0 %366
  %v369 = vmul.f32 %v351, %v367
  %v370 = vpack.c.bf16 %v229, %v229
  %372 = vrot.lane.b32.xlu0 %v370, 32
  %v373 = vpop.permute.xlu0 %372
  %v375 = vsel %vm161, %v373, 0
  %377 = vmatprep.subr.bf16.mxu0 0
  %378 = vmatpush1.bf16.msra.mxu0 0
  %379 = vmatprep.subr.bf16.mxu0 0
  %380 = vmatpush1.bf16.msra.mxu0 0
  %381 = vmatprep.subr.bf16.mxu0 0
  %382 = vmatpush1.bf16.msra.mxu0 0
  %383 = vmatprep.subr.bf16.mxu0 0
  %384 = vmatpush1.bf16.msra.mxu0 0
  %385 = vmatprep.subr.bf16.mxu0 0
  %386 = vmatpush1.bf16.msra.mxu0 0
  %387 = vmatprep.subr.bf16.mxu0 0
  %388 = vmatpush1.bf16.msra.mxu0 0
  %389 = vmatprep.subr.bf16.mxu0 0
  %390 = vmatpush1.bf16.msra.mxu0 %v158
  %391 = vmatprep.subr.bf16.mxu0 0
  %392 = vmatpush1.bf16.msra.mxu0 %v157
  %393 = vmatprep.subr.bf16.mxu0 0
  %394 = vmatpush2.bf16.msra.mxu0 0
  %395 = vmatprep.subr.bf16.mxu0 0
  %396 = vmatpush2.bf16.msra.mxu0 0
  %397 = vmatprep.subr.bf16.mxu0 0
  %398 = vmatpush2.bf16.msra.mxu0 0
  %399 = vmatprep.subr.bf16.mxu0 0
  %400 = vmatpush2.bf16.msra.mxu0 0
  %401 = vmatprep.subr.bf16.mxu0 0
  %402 = vmatpush2.bf16.msra.mxu0 0
  %403 = vmatprep.subr.bf16.mxu0 0
  %404 = vmatpush2.bf16.msra.mxu0 0
  %405 = vmatprep.subr.bf16.mxu0 0
  %406 = vmatpush2.bf16.msra.mxu0 0
  %407 = vmatprep.subr.bf16.mxu0 0
  %408 = vmatpush2.bf16.msra.mxu0 0
  %409 = vmatprep.mubr.bf16.mxu0 0
  %410 = vmatmul.mubr.bf16.gmra.mxu0 %v375
  %v411 = vpop.f32.mrf.mxu0
  %v412 = vadd.f32 0.0, %v411
  %v413 = vpop.f32.mrf.mxu0
  %v414 = vpop.f32.mrf.mxu0
  %v415 = vpop.f32.mrf.mxu0
  %416 = vdwg.mxu0
  %v417 = vadd.f32 %v117, %v412
  %v418 = vxor.u32 %v417, 2147483648
  %v419 = vmul.f32 %v418, 1.442695
  %v420 = vpow.pop %v419
  %v421 = vadd.f32 %v420, 1.0
  %v422 = vrcp.pop %v421
  %v423 = vmul.f32 1.0, %v422
  %v424 = vtanh.pop %v417
  %v425 = vmul.f32 %v423, %v223
  %427 = vrot.lane.b32.xlu0 %v424, 64
  %v428 = vpop.permute.xlu0 %427
  %v430 = vmul.f32 %v423, %v428
  %432 = vrot.lane.b32.xlu0 %v430, 32
  %v433 = vpop.permute.xlu0 %432
  %v435 = vadd.f32 %v425, %v433
  %v436 = vtanh.pop %v435
  %438 = vrot.lane.b32.xlu0 %v436, 64
  %v439 = vpop.permute.xlu0 %438
  %v441 = vmul.f32 %v423, %v439
  %v442 = vadd.f32 %v441, %v232
  %v443 = vpack.c.bf16 %v442, %v442
  %v444 = vpack.c.bf16 %v369, %v369
  %446 = vrot.lane.b32.xlu0 %v444, 32
  %v447 = vpop.permute.xlu0 %446
  %v449 = vsel %vm161, %v447, 0
  %451 = vmatprep.subr.bf16.mxu0 0
  %452 = vmatpush1.bf16.msra.mxu0 0
  %453 = vmatprep.subr.bf16.mxu0 0
  %454 = vmatpush1.bf16.msra.mxu0 0
  %455 = vmatprep.subr.bf16.mxu0 0
  %456 = vmatpush1.bf16.msra.mxu0 0
  %457 = vmatprep.subr.bf16.mxu0 0
  %458 = vmatpush1.bf16.msra.mxu0 0
  %459 = vmatprep.subr.bf16.mxu0 0
  %460 = vmatpush1.bf16.msra.mxu0 0
  %461 = vmatprep.subr.bf16.mxu0 0
  %462 = vmatpush1.bf16.msra.mxu0 0
  %463 = vmatprep.subr.bf16.mxu0 0
  %464 = vmatpush1.bf16.msra.mxu0 %v245
  %465 = vmatprep.subr.bf16.mxu0 0
  %466 = vmatpush1.bf16.msra.mxu0 %v244
  %467 = vmatprep.subr.bf16.mxu0 0
  %468 = vmatpush2.bf16.msra.mxu0 0
  %469 = vmatprep.subr.bf16.mxu0 0
  %470 = vmatpush2.bf16.msra.mxu0 0
  %471 = vmatprep.subr.bf16.mxu0 0
  %472 = vmatpush2.bf16.msra.mxu0 0
  %473 = vmatprep.subr.bf16.mxu0 0
  %474 = vmatpush2.bf16.msra.mxu0 0
  %475 = vmatprep.subr.bf16.mxu0 0
  %476 = vmatpush2.bf16.msra.mxu0 0
  %477 = vmatprep.subr.bf16.mxu0 0
  %478 = vmatpush2.bf16.msra.mxu0 0
  %479 = vmatprep.subr.bf16.mxu0 0
  %480 = vmatpush2.bf16.msra.mxu0 0
  %481 = vmatprep.subr.bf16.mxu0 0
  %482 = vmatpush2.bf16.msra.mxu0 0
  %483 = vmatprep.mubr.bf16.mxu0 0
  %484 = vmatmul.mubr.bf16.gmra.mxu0 %v449
  %v485 = vpop.f32.mrf.mxu0
  %v486 = vadd.f32 0.0, %v485
  %v487 = vpop.f32.mrf.mxu0
  %v488 = vpop.f32.mrf.mxu0
  %v489 = vpop.f32.mrf.mxu0
  %490 = vdwg.mxu0
  %492 = vrot.lane.b32.xlu0 %v443, 32
  %v493 = vpop.permute.xlu0 %492
  %v495 = vsel %vm161, %v493, 0
  %497 = vmatprep.subr.bf16.mxu0 0
  %498 = vmatpush1.bf16.msra.mxu0 0
  %499 = vmatprep.subr.bf16.mxu0 0
  %500 = vmatpush1.bf16.msra.mxu0 0
  %501 = vmatprep.subr.bf16.mxu0 0
  %502 = vmatpush1.bf16.msra.mxu0 0
  %503 = vmatprep.subr.bf16.mxu0 0
  %504 = vmatpush1.bf16.msra.mxu0 0
  %505 = vmatprep.subr.bf16.mxu0 0
  %506 = vmatpush1.bf16.msra.mxu0 0
  %507 = vmatprep.subr.bf16.mxu0 0
  %508 = vmatpush1.bf16.msra.mxu0 0
  %509 = vmatprep.subr.bf16.mxu0 0
  %510 = vmatpush1.bf16.msra.mxu0 %v300
  %511 = vmatprep.subr.bf16.mxu0 0
  %512 = vmatpush1.bf16.msra.mxu0 %v299
  %513 = vmatprep.subr.bf16.mxu0 0
  %514 = vmatpush2.bf16.msra.mxu0 0
  %515 = vmatprep.subr.bf16.mxu0 0
  %516 = vmatpush2.bf16.msra.mxu0 0
  %517 = vmatprep.subr.bf16.mxu0 0
  %518 = vmatpush2.bf16.msra.mxu0 0
  %519 = vmatprep.subr.bf16.mxu0 0
  %520 = vmatpush2.bf16.msra.mxu0 0
  %521 = vmatprep.subr.bf16.mxu0 0
  %522 = vmatpush2.bf16.msra.mxu0 0
  %523 = vmatprep.subr.bf16.mxu0 0
  %524 = vmatpush2.bf16.msra.mxu0 0
  %525 = vmatprep.subr.bf16.mxu0 0
  %526 = vmatpush2.bf16.msra.mxu0 0
  %527 = vmatprep.subr.bf16.mxu0 0
  %528 = vmatpush2.bf16.msra.mxu0 0
  %529 = vmatprep.mubr.bf16.mxu0 0
  %530 = vmatmul.mubr.bf16.gmra.mxu0 %v495
  %v531 = vpop.f32.mrf.mxu0
  %v532 = vadd.f32 %v486, %v531
  %v533 = vpop.f32.mrf.mxu0
  %v534 = vpop.f32.mrf.mxu0
  %v535 = vpop.f32.mrf.mxu0
  %536 = vdwg.mxu0
  %v537 = vxor.u32 %v532, 2147483648
  %v538 = vmul.f32 %v537, 1.442695
  %v539 = vpow.pop %v538
  %v540 = vadd.f32 %v539, 1.0
  %v541 = vrcp.pop %v540
  %v542 = vmul.f32 1.0, %v541
  %v543 = vtanh.pop %v532
  %v544 = vmul.f32 %v542, %v363
  %546 = vrot.lane.b32.xlu0 %v543, 64
  %v547 = vpop.permute.xlu0 %546
  %v549 = vmul.f32 %v542, %v547
  %551 = vrot.lane.b32.xlu0 %v549, 32
  %v552 = vpop.permute.xlu0 %551
  %v554 = vadd.f32 %v544, %v552
  %v555 = vtanh.pop %v554
  %557 = vrot.lane.b32.xlu0 %v555, 64
  %v558 = vpop.permute.xlu0 %557
  %v560 = vmul.f32 %v542, %v558
  %v561 = vpack.c.bf16 %v441, %v441
  %563 = vrot.lane.b32.xlu0 %v561, 32
  %v564 = vpop.permute.xlu0 %563
  %v566 = vsel %vm161, %v564, 0
  %568 = vmatprep.subr.bf16.mxu0 0
  %569 = vmatpush1.bf16.msra.mxu0 0
  %570 = vmatprep.subr.bf16.mxu0 0
  %571 = vmatpush1.bf16.msra.mxu0 0
  %572 = vmatprep.subr.bf16.mxu0 0
  %573 = vmatpush1.bf16.msra.mxu0 0
  %574 = vmatprep.subr.bf16.mxu0 0
  %575 = vmatpush1.bf16.msra.mxu0 0
  %576 = vmatprep.subr.bf16.mxu0 0
  %577 = vmatpush1.bf16.msra.mxu0 0
  %578 = vmatprep.subr.bf16.mxu0 0
  %579 = vmatpush1.bf16.msra.mxu0 0
  %580 = vmatprep.subr.bf16.mxu0 0
  %581 = vmatpush1.bf16.msra.mxu0 %v158
  %582 = vmatprep.subr.bf16.mxu0 0
  %583 = vmatpush1.bf16.msra.mxu0 %v157
  %584 = vmatprep.subr.bf16.mxu0 0
  %585 = vmatpush2.bf16.msra.mxu0 0
  %586 = vmatprep.subr.bf16.mxu0 0
  %587 = vmatpush2.bf16.msra.mxu0 0
  %588 = vmatprep.subr.bf16.mxu0 0
  %589 = vmatpush2.bf16.msra.mxu0 0
  %590 = vmatprep.subr.bf16.mxu0 0
  %591 = vmatpush2.bf16.msra.mxu0 0
  %592 = vmatprep.subr.bf16.mxu0 0
  %593 = vmatpush2.bf16.msra.mxu0 0
  %594 = vmatprep.subr.bf16.mxu0 0
  %595 = vmatpush2.bf16.msra.mxu0 0
  %596 = vmatprep.subr.bf16.mxu0 0
  %597 = vmatpush2.bf16.msra.mxu0 0
  %598 = vmatprep.subr.bf16.mxu0 0
  %599 = vmatpush2.bf16.msra.mxu0 0
  %600 = vmatprep.mubr.bf16.mxu0 0
  %601 = vmatmul.mubr.bf16.gmra.mxu0 %v566
  %v602 = vpop.f32.mrf.mxu0
  %v603 = vadd.f32 0.0, %v602
  %v604 = vpop.f32.mrf.mxu0
  %v605 = vpop.f32.mrf.mxu0
  %v606 = vpop.f32.mrf.mxu0
  %607 = vdwg.mxu0
  %v608 = vadd.f32 %v122, %v603
  %v609 = vxor.u32 %v608, 2147483648
  %v610 = vmul.f32 %v609, 1.442695
  %v611 = vpow.pop %v610
  %v612 = vadd.f32 %v611, 1.0
  %v613 = vrcp.pop %v612
  %v614 = vmul.f32 1.0, %v613
  %v615 = vtanh.pop %v608
  %v616 = vmul.f32 %v614, %v435
  %618 = vrot.lane.b32.xlu0 %v615, 64
  %v619 = vpop.permute.xlu0 %618
  %v621 = vmul.f32 %v614, %v619
  %623 = vrot.lane.b32.xlu0 %v621, 32
  %v624 = vpop.permute.xlu0 %623
  %v626 = vadd.f32 %v616, %v624
  %v627 = vtanh.pop %v626
  %629 = vrot.lane.b32.xlu0 %v627, 64
  %v630 = vpop.permute.xlu0 %629
  %v632 = vmul.f32 %v614, %v630
  %v633 = vadd.f32 %v632, %v232
  %v634 = vpack.c.bf16 %v633, %v633
  %v635 = vpack.c.bf16 %v560, %v560
  %637 = vrot.lane.b32.xlu0 %v635, 32
  %v638 = vpop.permute.xlu0 %637
  %v640 = vsel %vm161, %v638, 0
  %642 = vmatprep.subr.bf16.mxu0 0
  %643 = vmatpush1.bf16.msra.mxu0 0
  %644 = vmatprep.subr.bf16.mxu0 0
  %645 = vmatpush1.bf16.msra.mxu0 0
  %646 = vmatprep.subr.bf16.mxu0 0
  %647 = vmatpush1.bf16.msra.mxu0 0
  %648 = vmatprep.subr.bf16.mxu0 0
  %649 = vmatpush1.bf16.msra.mxu0 0
  %650 = vmatprep.subr.bf16.mxu0 0
  %651 = vmatpush1.bf16.msra.mxu0 0
  %652 = vmatprep.subr.bf16.mxu0 0
  %653 = vmatpush1.bf16.msra.mxu0 0
  %654 = vmatprep.subr.bf16.mxu0 0
  %655 = vmatpush1.bf16.msra.mxu0 %v245
  %656 = vmatprep.subr.bf16.mxu0 0
  %657 = vmatpush1.bf16.msra.mxu0 %v244
  %658 = vmatprep.subr.bf16.mxu0 0
  %659 = vmatpush2.bf16.msra.mxu0 0
  %660 = vmatprep.subr.bf16.mxu0 0
  %661 = vmatpush2.bf16.msra.mxu0 0
  %662 = vmatprep.subr.bf16.mxu0 0
  %663 = vmatpush2.bf16.msra.mxu0 0
  %664 = vmatprep.subr.bf16.mxu0 0
  %665 = vmatpush2.bf16.msra.mxu0 0
  %666 = vmatprep.subr.bf16.mxu0 0
  %667 = vmatpush2.bf16.msra.mxu0 0
  %668 = vmatprep.subr.bf16.mxu0 0
  %669 = vmatpush2.bf16.msra.mxu0 0
  %670 = vmatprep.subr.bf16.mxu0 0
  %671 = vmatpush2.bf16.msra.mxu0 0
  %672 = vmatprep.subr.bf16.mxu0 0
  %673 = vmatpush2.bf16.msra.mxu0 0
  %674 = vmatprep.mubr.bf16.mxu0 0
  %675 = vmatmul.mubr.bf16.gmra.mxu0 %v640
  %v676 = vpop.f32.mrf.mxu0
  %v677 = vadd.f32 0.0, %v676
  %v678 = vpop.f32.mrf.mxu0
  %v679 = vpop.f32.mrf.mxu0
  %v680 = vpop.f32.mrf.mxu0
  %681 = vdwg.mxu0
  %683 = vrot.lane.b32.xlu0 %v634, 32
  %v684 = vpop.permute.xlu0 %683
  %v686 = vsel %vm161, %v684, 0
  %688 = vmatprep.subr.bf16.mxu0 0
  %689 = vmatpush1.bf16.msra.mxu0 0
  %690 = vmatprep.subr.bf16.mxu0 0
  %691 = vmatpush1.bf16.msra.mxu0 0
  %692 = vmatprep.subr.bf16.mxu0 0
  %693 = vmatpush1.bf16.msra.mxu0 0
  %694 = vmatprep.subr.bf16.mxu0 0
  %695 = vmatpush1.bf16.msra.mxu0 0
  %696 = vmatprep.subr.bf16.mxu0 0
  %697 = vmatpush1.bf16.msra.mxu0 0
  %698 = vmatprep.subr.bf16.mxu0 0
  %699 = vmatpush1.bf16.msra.mxu0 0
  %700 = vmatprep.subr.bf16.mxu0 0
  %701 = vmatpush1.bf16.msra.mxu0 %v300
  %702 = vmatprep.subr.bf16.mxu0 0
  %703 = vmatpush1.bf16.msra.mxu0 %v299
  %704 = vmatprep.subr.bf16.mxu0 0
  %705 = vmatpush2.bf16.msra.mxu0 0
  %706 = vmatprep.subr.bf16.mxu0 0
  %707 = vmatpush2.bf16.msra.mxu0 0
  %708 = vmatprep.subr.bf16.mxu0 0
  %709 = vmatpush2.bf16.msra.mxu0 0
  %710 = vmatprep.subr.bf16.mxu0 0
  %711 = vmatpush2.bf16.msra.mxu0 0
  %712 = vmatprep.subr.bf16.mxu0 0
  %713 = vmatpush2.bf16.msra.mxu0 0
  %714 = vmatprep.subr.bf16.mxu0 0
  %715 = vmatpush2.bf16.msra.mxu0 0
  %716 = vmatprep.subr.bf16.mxu0 0
  %717 = vmatpush2.bf16.msra.mxu0 0
  %718 = vmatprep.subr.bf16.mxu0 0
  %719 = vmatpush2.bf16.msra.mxu0 0
  %720 = vmatprep.mubr.bf16.mxu0 0
  %721 = vmatmul.mubr.bf16.gmra.mxu0 %v686
  %v722 = vpop.f32.mrf.mxu0
  %v723 = vadd.f32 %v677, %v722
  %v724 = vpop.f32.mrf.mxu0
  %v725 = vpop.f32.mrf.mxu0
  %v726 = vpop.f32.mrf.mxu0
  %727 = vdwg.mxu0
  %v728 = vxor.u32 %v723, 2147483648
  %v729 = vmul.f32 %v728, 1.442695
  %v730 = vpow.pop %v729
  %v731 = vadd.f32 %v730, 1.0
  %v732 = vrcp.pop %v731
  %v733 = vmul.f32 1.0, %v732
  %v734 = vtanh.pop %v723
  %v735 = vmul.f32 %v733, %v554
  %737 = vrot.lane.b32.xlu0 %v734, 64
  %v738 = vpop.permute.xlu0 %737
  %v740 = vmul.f32 %v733, %v738
  %742 = vrot.lane.b32.xlu0 %v740, 32
  %v743 = vpop.permute.xlu0 %742
  %v745 = vadd.f32 %v735, %v743
  %v746 = vtanh.pop %v745
  %748 = vrot.lane.b32.xlu0 %v746, 64
  %v749 = vpop.permute.xlu0 %748
  %v751 = vmul.f32 %v733, %v749
  %v752 = vpack.c.bf16 %v632, %v632
  %754 = vrot.lane.b32.xlu0 %v752, 32
  %v755 = vpop.permute.xlu0 %754
  %v757 = vsel %vm161, %v755, 0
  %759 = vmatprep.subr.bf16.mxu0 0
  %760 = vmatpush1.bf16.msra.mxu0 0
  %761 = vmatprep.subr.bf16.mxu0 0
  %762 = vmatpush1.bf16.msra.mxu0 0
  %763 = vmatprep.subr.bf16.mxu0 0
  %764 = vmatpush1.bf16.msra.mxu0 0
  %765 = vmatprep.subr.bf16.mxu0 0
  %766 = vmatpush1.bf16.msra.mxu0 0
  %767 = vmatprep.subr.bf16.mxu0 0
  %768 = vmatpush1.bf16.msra.mxu0 0
  %769 = vmatprep.subr.bf16.mxu0 0
  %770 = vmatpush1.bf16.msra.mxu0 0
  %771 = vmatprep.subr.bf16.mxu0 0
  %772 = vmatpush1.bf16.msra.mxu0 %v158
  %773 = vmatprep.subr.bf16.mxu0 0
  %774 = vmatpush1.bf16.msra.mxu0 %v157
  %775 = vmatprep.subr.bf16.mxu0 0
  %776 = vmatpush2.bf16.msra.mxu0 0
  %777 = vmatprep.subr.bf16.mxu0 0
  %778 = vmatpush2.bf16.msra.mxu0 0
  %779 = vmatprep.subr.bf16.mxu0 0
  %780 = vmatpush2.bf16.msra.mxu0 0
  %781 = vmatprep.subr.bf16.mxu0 0
  %782 = vmatpush2.bf16.msra.mxu0 0
  %783 = vmatprep.subr.bf16.mxu0 0
  %784 = vmatpush2.bf16.msra.mxu0 0
  %785 = vmatprep.subr.bf16.mxu0 0
  %786 = vmatpush2.bf16.msra.mxu0 0
  %787 = vmatprep.subr.bf16.mxu0 0
  %788 = vmatpush2.bf16.msra.mxu0 0
  %789 = vmatprep.subr.bf16.mxu0 0
  %790 = vmatpush2.bf16.msra.mxu0 0
  %791 = vmatprep.mubr.bf16.mxu0 0
  %792 = vmatmul.mubr.bf16.gmra.mxu0 %v757
  %v793 = vpop.f32.mrf.mxu0
  %v794 = vadd.f32 0.0, %v793
  %v795 = vpop.f32.mrf.mxu0
  %v796 = vpop.f32.mrf.mxu0
  %v797 = vpop.f32.mrf.mxu0
  %798 = vdwg.mxu0
  %v799 = vadd.f32 %v125, %v794
  %v800 = vxor.u32 %v799, 2147483648
  %v801 = vmul.f32 %v800, 1.442695
  %v802 = vpow.pop %v801
  %v803 = vadd.f32 %v802, 1.0
  %v804 = vrcp.pop %v803
  %v805 = vmul.f32 1.0, %v804
  %v806 = vtanh.pop %v799
  %v807 = vmul.f32 %v805, %v626
  %809 = vrot.lane.b32.xlu0 %v806, 64
  %v810 = vpop.permute.xlu0 %809
  %v812 = vmul.f32 %v805, %v810
  %814 = vrot.lane.b32.xlu0 %v812, 32
  %v815 = vpop.permute.xlu0 %814
  %v817 = vadd.f32 %v807, %v815
  %v818 = vtanh.pop %v817
  %820 = vrot.lane.b32.xlu0 %v818, 64
  %v821 = vpop.permute.xlu0 %820
  %v823 = vmul.f32 %v805, %v821
  %v824 = vadd.f32 %v823, %v232
  %v825 = vpack.c.bf16 %v824, %v824
  %v826 = vpack.c.bf16 %v751, %v751
  %828 = vrot.lane.b32.xlu0 %v826, 32
  %v829 = vpop.permute.xlu0 %828
  %v831 = vsel %vm161, %v829, 0
  %833 = vmatprep.subr.bf16.mxu0 0
  %834 = vmatpush1.bf16.msra.mxu0 0
  %835 = vmatprep.subr.bf16.mxu0 0
  %836 = vmatpush1.bf16.msra.mxu0 0
  %837 = vmatprep.subr.bf16.mxu0 0
  %838 = vmatpush1.bf16.msra.mxu0 0
  %839 = vmatprep.subr.bf16.mxu0 0
  %840 = vmatpush1.bf16.msra.mxu0 0
  %841 = vmatprep.subr.bf16.mxu0 0
  %842 = vmatpush1.bf16.msra.mxu0 0
  %843 = vmatprep.subr.bf16.mxu0 0
  %844 = vmatpush1.bf16.msra.mxu0 0
  %845 = vmatprep.subr.bf16.mxu0 0
  %846 = vmatpush1.bf16.msra.mxu0 %v245
  %847 = vmatprep.subr.bf16.mxu0 0
  %848 = vmatpush1.bf16.msra.mxu0 %v244
  %849 = vmatprep.subr.bf16.mxu0 0
  %850 = vmatpush2.bf16.msra.mxu0 0
  %851 = vmatprep.subr.bf16.mxu0 0
  %852 = vmatpush2.bf16.msra.mxu0 0
  %853 = vmatprep.subr.bf16.mxu0 0
  %854 = vmatpush2.bf16.msra.mxu0 0
  %855 = vmatprep.subr.bf16.mxu0 0
  %856 = vmatpush2.bf16.msra.mxu0 0
  %857 = vmatprep.subr.bf16.mxu0 0
  %858 = vmatpush2.bf16.msra.mxu0 0
  %859 = vmatprep.subr.bf16.mxu0 0
  %860 = vmatpush2.bf16.msra.mxu0 0
  %861 = vmatprep.subr.bf16.mxu0 0
  %862 = vmatpush2.bf16.msra.mxu0 0
  %863 = vmatprep.subr.bf16.mxu0 0
  %864 = vmatpush2.bf16.msra.mxu0 0
  %865 = vmatprep.mubr.bf16.mxu0 0
  %866 = vmatmul.mubr.bf16.gmra.mxu0 %v831
  %v867 = vpop.f32.mrf.mxu0
  %v868 = vadd.f32 0.0, %v867
  %v869 = vpop.f32.mrf.mxu0
  %v870 = vpop.f32.mrf.mxu0
  %v871 = vpop.f32.mrf.mxu0
  %872 = vdwg.mxu0
  %874 = vrot.lane.b32.xlu0 %v825, 32
  %v875 = vpop.permute.xlu0 %874
  %v877 = vsel %vm161, %v875, 0
  %879 = vmatprep.subr.bf16.mxu0 0
  %880 = vmatpush1.bf16.msra.mxu0 0
  %881 = vmatprep.subr.bf16.mxu0 0
  %882 = vmatpush1.bf16.msra.mxu0 0
  %883 = vmatprep.subr.bf16.mxu0 0
  %884 = vmatpush1.bf16.msra.mxu0 0
  %885 = vmatprep.subr.bf16.mxu0 0
  %886 = vmatpush1.bf16.msra.mxu0 0
  %887 = vmatprep.subr.bf16.mxu0 0
  %888 = vmatpush1.bf16.msra.mxu0 0
  %889 = vmatprep.subr.bf16.mxu0 0
  %890 = vmatpush1.bf16.msra.mxu0 0
  %891 = vmatprep.subr.bf16.mxu0 0
  %892 = vmatpush1.bf16.msra.mxu0 %v300
  %893 = vmatprep.subr.bf16.mxu0 0
  %894 = vmatpush1.bf16.msra.mxu0 %v299
  %895 = vmatprep.subr.bf16.mxu0 0
  %896 = vmatpush2.bf16.msra.mxu0 0
  %897 = vmatprep.subr.bf16.mxu0 0
  %898 = vmatpush2.bf16.msra.mxu0 0
  %899 = vmatprep.subr.bf16.mxu0 0
  %900 = vmatpush2.bf16.msra.mxu0 0
  %901 = vmatprep.subr.bf16.mxu0 0
  %902 = vmatpush2.bf16.msra.mxu0 0
  %903 = vmatprep.subr.bf16.mxu0 0
  %904 = vmatpush2.bf16.msra.mxu0 0
  %905 = vmatprep.subr.bf16.mxu0 0
  %906 = vmatpush2.bf16.msra.mxu0 0
  %907 = vmatprep.subr.bf16.mxu0 0
  %908 = vmatpush2.bf16.msra.mxu0 0
  %909 = vmatprep.subr.bf16.mxu0 0
  %910 = vmatpush2.bf16.msra.mxu0 0
  %911 = vmatprep.mubr.bf16.mxu0 0
  %912 = vmatmul.mubr.bf16.gmra.mxu0 %v877
  %v913 = vpop.f32.mrf.mxu0
  %v914 = vadd.f32 %v868, %v913
  %v915 = vpop.f32.mrf.mxu0
  %v916 = vpop.f32.mrf.mxu0
  %v917 = vpop.f32.mrf.mxu0
  %918 = vdwg.mxu0
  %v919 = vxor.u32 %v914, 2147483648
  %v920 = vmul.f32 %v919, 1.442695
  %v921 = vpow.pop %v920
  %v922 = vadd.f32 %v921, 1.0
  %v923 = vrcp.pop %v922
  %v924 = vmul.f32 1.0, %v923
  %v925 = vtanh.pop %v914
  %v926 = vmul.f32 %v924, %v745
  %928 = vrot.lane.b32.xlu0 %v925, 64
  %v929 = vpop.permute.xlu0 %928
  %v931 = vmul.f32 %v924, %v929
  %933 = vrot.lane.b32.xlu0 %v931, 32
  %v934 = vpop.permute.xlu0 %933
  %v936 = vadd.f32 %v926, %v934
  %v937 = vtanh.pop %v936
  %939 = vrot.lane.b32.xlu0 %v937, 64
  %v940 = vpop.permute.xlu0 %939
  %v942 = vmul.f32 %v924, %v940
  %v943 = vpack.c.bf16 %v823, %v823
  %945 = vrot.lane.b32.xlu0 %v943, 32
  %v946 = vpop.permute.xlu0 %945
  %v948 = vsel %vm161, %v946, 0
  %950 = vmatprep.subr.bf16.mxu0 0
  %951 = vmatpush1.bf16.msra.mxu0 0
  %952 = vmatprep.subr.bf16.mxu0 0
  %953 = vmatpush1.bf16.msra.mxu0 0
  %954 = vmatprep.subr.bf16.mxu0 0
  %955 = vmatpush1.bf16.msra.mxu0 0
  %956 = vmatprep.subr.bf16.mxu0 0
  %957 = vmatpush1.bf16.msra.mxu0 0
  %958 = vmatprep.subr.bf16.mxu0 0
  %959 = vmatpush1.bf16.msra.mxu0 0
  %960 = vmatprep.subr.bf16.mxu0 0
  %961 = vmatpush1.bf16.msra.mxu0 0
  %962 = vmatprep.subr.bf16.mxu0 0
  %963 = vmatpush1.bf16.msra.mxu0 %v158
  %964 = vmatprep.subr.bf16.mxu0 0
  %965 = vmatpush1.bf16.msra.mxu0 %v157
  %966 = vmatprep.subr.bf16.mxu0 0
  %967 = vmatpush2.bf16.msra.mxu0 0
  %968 = vmatprep.subr.bf16.mxu0 0
  %969 = vmatpush2.bf16.msra.mxu0 0
  %970 = vmatprep.subr.bf16.mxu0 0
  %971 = vmatpush2.bf16.msra.mxu0 0
  %972 = vmatprep.subr.bf16.mxu0 0
  %973 = vmatpush2.bf16.msra.mxu0 0
  %974 = vmatprep.subr.bf16.mxu0 0
  %975 = vmatpush2.bf16.msra.mxu0 0
  %976 = vmatprep.subr.bf16.mxu0 0
  %977 = vmatpush2.bf16.msra.mxu0 0
  %978 = vmatprep.subr.bf16.mxu0 0
  %979 = vmatpush2.bf16.msra.mxu0 0
  %980 = vmatprep.subr.bf16.mxu0 0
  %981 = vmatpush2.bf16.msra.mxu0 0
  %982 = vmatprep.mubr.bf16.mxu0 0
  %983 = vmatmul.mubr.bf16.gmra.mxu0 %v948
  %v984 = vpop.f32.mrf.mxu0
  %v985 = vadd.f32 0.0, %v984
  %v986 = vpop.f32.mrf.mxu0
  %v987 = vpop.f32.mrf.mxu0
  %v988 = vpop.f32.mrf.mxu0
  %989 = vdwg.mxu0
  %v990 = vadd.f32 %v130, %v985
  %v991 = vxor.u32 %v990, 2147483648
  %v992 = vmul.f32 %v991, 1.442695
  %v993 = vpow.pop %v992
  %v994 = vadd.f32 %v993, 1.0
  %v995 = vrcp.pop %v994
  %v996 = vmul.f32 1.0, %v995
  %v997 = vtanh.pop %v990
  %v998 = vmul.f32 %v996, %v817
  %1000 = vrot.lane.b32.xlu0 %v997, 64
  %v1001 = vpop.permute.xlu0 %1000
  %v1003 = vmul.f32 %v996, %v1001
  %1005 = vrot.lane.b32.xlu0 %v1003, 32
  %v1006 = vpop.permute.xlu0 %1005
  %v1008 = vadd.f32 %v998, %v1006
  %v1009 = vtanh.pop %v1008
  %1011 = vrot.lane.b32.xlu0 %v1009, 64
  %v1012 = vpop.permute.xlu0 %1011
  %v1014 = vmul.f32 %v996, %v1012
  %v1015 = vadd.f32 %v1014, %v232
  %v1016 = vpack.c.bf16 %v1015, %v1015
  %v1017 = vpack.c.bf16 %v942, %v942
  %1019 = vrot.lane.b32.xlu0 %v1017, 32
  %v1020 = vpop.permute.xlu0 %1019
  %v1022 = vsel %vm161, %v1020, 0
  %1024 = vmatprep.subr.bf16.mxu0 0
  %1025 = vmatpush1.bf16.msra.mxu0 0
  %1026 = vmatprep.subr.bf16.mxu0 0
  %1027 = vmatpush1.bf16.msra.mxu0 0
  %1028 = vmatprep.subr.bf16.mxu0 0
  %1029 = vmatpush1.bf16.msra.mxu0 0
  %1030 = vmatprep.subr.bf16.mxu0 0
  %1031 = vmatpush1.bf16.msra.mxu0 0
  %1032 = vmatprep.subr.bf16.mxu0 0
  %1033 = vmatpush1.bf16.msra.mxu0 0
  %1034 = vmatprep.subr.bf16.mxu0 0
  %1035 = vmatpush1.bf16.msra.mxu0 0
  %1036 = vmatprep.subr.bf16.mxu0 0
  %1037 = vmatpush1.bf16.msra.mxu0 %v245
  %1038 = vmatprep.subr.bf16.mxu0 0
  %1039 = vmatpush1.bf16.msra.mxu0 %v244
  %1040 = vmatprep.subr.bf16.mxu0 0
  %1041 = vmatpush2.bf16.msra.mxu0 0
  %1042 = vmatprep.subr.bf16.mxu0 0
  %1043 = vmatpush2.bf16.msra.mxu0 0
  %1044 = vmatprep.subr.bf16.mxu0 0
  %1045 = vmatpush2.bf16.msra.mxu0 0
  %1046 = vmatprep.subr.bf16.mxu0 0
  %1047 = vmatpush2.bf16.msra.mxu0 0
  %1048 = vmatprep.subr.bf16.mxu0 0
  %1049 = vmatpush2.bf16.msra.mxu0 0
  %1050 = vmatprep.subr.bf16.mxu0 0
  %1051 = vmatpush2.bf16.msra.mxu0 0
  %1052 = vmatprep.subr.bf16.mxu0 0
  %1053 = vmatpush2.bf16.msra.mxu0 0
  %1054 = vmatprep.subr.bf16.mxu0 0
  %1055 = vmatpush2.bf16.msra.mxu0 0
  %1056 = vmatprep.mubr.bf16.mxu0 0
  %1057 = vmatmul.mubr.bf16.gmra.mxu0 %v1022
  %v1058 = vpop.f32.mrf.mxu0
  %v1059 = vadd.f32 0.0, %v1058
  %v1060 = vpop.f32.mrf.mxu0
  %v1061 = vpop.f32.mrf.mxu0
  %v1062 = vpop.f32.mrf.mxu0
  %1063 = vdwg.mxu0
  %1065 = vrot.lane.b32.xlu0 %v1016, 32
  %v1066 = vpop.permute.xlu0 %1065
  %v1068 = vsel %vm161, %v1066, 0
  %1070 = vmatprep.subr.bf16.mxu0 0
  %1071 = vmatpush1.bf16.msra.mxu0 0
  %1072 = vmatprep.subr.bf16.mxu0 0
  %1073 = vmatpush1.bf16.msra.mxu0 0
  %1074 = vmatprep.subr.bf16.mxu0 0
  %1075 = vmatpush1.bf16.msra.mxu0 0
  %1076 = vmatprep.subr.bf16.mxu0 0
  %1077 = vmatpush1.bf16.msra.mxu0 0
  %1078 = vmatprep.subr.bf16.mxu0 0
  %1079 = vmatpush1.bf16.msra.mxu0 0
  %1080 = vmatprep.subr.bf16.mxu0 0
  %1081 = vmatpush1.bf16.msra.mxu0 0
  %1082 = vmatprep.subr.bf16.mxu0 0
  %1083 = vmatpush1.bf16.msra.mxu0 %v300
  %1084 = vmatprep.subr.bf16.mxu0 0
  %1085 = vmatpush1.bf16.msra.mxu0 %v299
  %1086 = vmatprep.subr.bf16.mxu0 0
  %1087 = vmatpush2.bf16.msra.mxu0 0
  %1088 = vmatprep.subr.bf16.mxu0 0
  %1089 = vmatpush2.bf16.msra.mxu0 0
  %1090 = vmatprep.subr.bf16.mxu0 0
  %1091 = vmatpush2.bf16.msra.mxu0 0
  %1092 = vmatprep.subr.bf16.mxu0 0
  %1093 = vmatpush2.bf16.msra.mxu0 0
  %1094 = vmatprep.subr.bf16.mxu0 0
  %1095 = vmatpush2.bf16.msra.mxu0 0
  %1096 = vmatprep.subr.bf16.mxu0 0
  %1097 = vmatpush2.bf16.msra.mxu0 0
  %1098 = vmatprep.subr.bf16.mxu0 0
  %1099 = vmatpush2.bf16.msra.mxu0 0
  %1100 = vmatprep.subr.bf16.mxu0 0
  %1101 = vmatpush2.bf16.msra.mxu0 0
  %1102 = vmatprep.mubr.bf16.mxu0 0
  %1103 = vmatmul.mubr.bf16.gmra.mxu0 %v1068
  %v1104 = vpop.f32.mrf.mxu0
  %v1105 = vadd.f32 %v1059, %v1104
  %v1106 = vpop.f32.mrf.mxu0
  %v1107 = vpop.f32.mrf.mxu0
  %v1108 = vpop.f32.mrf.mxu0
  %1109 = vdwg.mxu0
  %v1110 = vxor.u32 %v1105, 2147483648
  %v1111 = vmul.f32 %v1110, 1.442695
  %v1112 = vpow.pop %v1111
  %v1113 = vadd.f32 %v1112, 1.0
  %v1114 = vrcp.pop %v1113
  %v1115 = vmul.f32 1.0, %v1114
  %v1116 = vtanh.pop %v1105
  %v1117 = vmul.f32 %v1115, %v936
  %1119 = vrot.lane.b32.xlu0 %v1116, 64
  %v1120 = vpop.permute.xlu0 %1119
  %v1122 = vmul.f32 %v1115, %v1120
  %1124 = vrot.lane.b32.xlu0 %v1122, 32
  %v1125 = vpop.permute.xlu0 %1124
  %v1127 = vadd.f32 %v1117, %v1125
  %v1128 = vtanh.pop %v1127
  %1130 = vrot.lane.b32.xlu0 %v1128, 64
  %v1131 = vpop.permute.xlu0 %1130
  %v1133 = vmul.f32 %v1115, %v1131
  %v1134 = vpack.c.bf16 %v1014, %v1014
  %1136 = vrot.lane.b32.xlu0 %v1134, 32
  %v1137 = vpop.permute.xlu0 %1136
  %v1139 = vsel %vm161, %v1137, 0
  %1141 = vmatprep.subr.bf16.mxu0 0
  %1142 = vmatpush1.bf16.msra.mxu0 0
  %1143 = vmatprep.subr.bf16.mxu0 0
  %1144 = vmatpush1.bf16.msra.mxu0 0
  %1145 = vmatprep.subr.bf16.mxu0 0
  %1146 = vmatpush1.bf16.msra.mxu0 0
  %1147 = vmatprep.subr.bf16.mxu0 0
  %1148 = vmatpush1.bf16.msra.mxu0 0
  %1149 = vmatprep.subr.bf16.mxu0 0
  %1150 = vmatpush1.bf16.msra.mxu0 0
  %1151 = vmatprep.subr.bf16.mxu0 0
  %1152 = vmatpush1.bf16.msra.mxu0 0
  %1153 = vmatprep.subr.bf16.mxu0 0
  %1154 = vmatpush1.bf16.msra.mxu0 %v158
  %1155 = vmatprep.subr.bf16.mxu0 0
  %1156 = vmatpush1.bf16.msra.mxu0 %v157
  %1157 = vmatprep.subr.bf16.mxu0 0
  %1158 = vmatpush2.bf16.msra.mxu0 0
  %1159 = vmatprep.subr.bf16.mxu0 0
  %1160 = vmatpush2.bf16.msra.mxu0 0
  %1161 = vmatprep.subr.bf16.mxu0 0
  %1162 = vmatpush2.bf16.msra.mxu0 0
  %1163 = vmatprep.subr.bf16.mxu0 0
  %1164 = vmatpush2.bf16.msra.mxu0 0
  %1165 = vmatprep.subr.bf16.mxu0 0
  %1166 = vmatpush2.bf16.msra.mxu0 0
  %1167 = vmatprep.subr.bf16.mxu0 0
  %1168 = vmatpush2.bf16.msra.mxu0 0
  %1169 = vmatprep.subr.bf16.mxu0 0
  %1170 = vmatpush2.bf16.msra.mxu0 0
  %1171 = vmatprep.subr.bf16.mxu0 0
  %1172 = vmatpush2.bf16.msra.mxu0 0
  %1173 = vmatprep.mubr.bf16.mxu0 0
  %1174 = vmatmul.mubr.bf16.gmra.mxu0 %v1139
  %v1175 = vpop.f32.mrf.mxu0
  %v1176 = vadd.f32 0.0, %v1175
  %v1177 = vpop.f32.mrf.mxu0
  %v1178 = vpop.f32.mrf.mxu0
  %v1179 = vpop.f32.mrf.mxu0
  %1180 = vdwg.mxu0
  %v1181 = vadd.f32 %v133, %v1176
  %v1182 = vxor.u32 %v1181, 2147483648
  %v1183 = vmul.f32 %v1182, 1.442695
  %v1184 = vpow.pop %v1183
  %v1185 = vadd.f32 %v1184, 1.0
  %v1186 = vrcp.pop %v1185
  %v1187 = vmul.f32 1.0, %v1186
  %v1188 = vtanh.pop %v1181
  %v1189 = vmul.f32 %v1187, %v1008
  %1191 = vrot.lane.b32.xlu0 %v1188, 64
  %v1192 = vpop.permute.xlu0 %1191
  %v1194 = vmul.f32 %v1187, %v1192
  %1196 = vrot.lane.b32.xlu0 %v1194, 32
  %v1197 = vpop.permute.xlu0 %1196
  %v1199 = vadd.f32 %v1189, %v1197
  %v1200 = vtanh.pop %v1199
  %1202 = vrot.lane.b32.xlu0 %v1200, 64
  %v1203 = vpop.permute.xlu0 %1202
  %v1205 = vmul.f32 %v1187, %v1203
  %v1206 = vadd.f32 %v1205, %v232
  %v1207 = vpack.c.bf16 %v1206, %v1206
  %v1208 = vpack.c.bf16 %v1133, %v1133
  %1210 = vrot.lane.b32.xlu0 %v1208, 32
  %v1211 = vpop.permute.xlu0 %1210
  %v1213 = vsel %vm161, %v1211, 0
  %1215 = vmatprep.subr.bf16.mxu0 0
  %1216 = vmatpush1.bf16.msra.mxu0 0
  %1217 = vmatprep.subr.bf16.mxu0 0
  %1218 = vmatpush1.bf16.msra.mxu0 0
  %1219 = vmatprep.subr.bf16.mxu0 0
  %1220 = vmatpush1.bf16.msra.mxu0 0
  %1221 = vmatprep.subr.bf16.mxu0 0
  %1222 = vmatpush1.bf16.msra.mxu0 0
  %1223 = vmatprep.subr.bf16.mxu0 0
  %1224 = vmatpush1.bf16.msra.mxu0 0
  %1225 = vmatprep.subr.bf16.mxu0 0
  %1226 = vmatpush1.bf16.msra.mxu0 0
  %1227 = vmatprep.subr.bf16.mxu0 0
  %1228 = vmatpush1.bf16.msra.mxu0 %v245
  %1229 = vmatprep.subr.bf16.mxu0 0
  %1230 = vmatpush1.bf16.msra.mxu0 %v244
  %1231 = vmatprep.subr.bf16.mxu0 0
  %1232 = vmatpush2.bf16.msra.mxu0 0
  %1233 = vmatprep.subr.bf16.mxu0 0
  %1234 = vmatpush2.bf16.msra.mxu0 0
  %1235 = vmatprep.subr.bf16.mxu0 0
  %1236 = vmatpush2.bf16.msra.mxu0 0
  %1237 = vmatprep.subr.bf16.mxu0 0
  %1238 = vmatpush2.bf16.msra.mxu0 0
  %1239 = vmatprep.subr.bf16.mxu0 0
  %1240 = vmatpush2.bf16.msra.mxu0 0
  %1241 = vmatprep.subr.bf16.mxu0 0
  %1242 = vmatpush2.bf16.msra.mxu0 0
  %1243 = vmatprep.subr.bf16.mxu0 0
  %1244 = vmatpush2.bf16.msra.mxu0 0
  %1245 = vmatprep.subr.bf16.mxu0 0
  %1246 = vmatpush2.bf16.msra.mxu0 0
  %1247 = vmatprep.mubr.bf16.mxu0 0
  %1248 = vmatmul.mubr.bf16.gmra.mxu0 %v1213
  %v1249 = vpop.f32.mrf.mxu0
  %v1250 = vadd.f32 0.0, %v1249
  %v1251 = vpop.f32.mrf.mxu0
  %v1252 = vpop.f32.mrf.mxu0
  %v1253 = vpop.f32.mrf.mxu0
  %1254 = vdwg.mxu0
  %1256 = vrot.lane.b32.xlu0 %v1207, 32
  %v1257 = vpop.permute.xlu0 %1256
  %v1259 = vsel %vm161, %v1257, 0
  %1261 = vmatprep.subr.bf16.mxu0 0
  %1262 = vmatpush1.bf16.msra.mxu0 0
  %1263 = vmatprep.subr.bf16.mxu0 0
  %1264 = vmatpush1.bf16.msra.mxu0 0
  %1265 = vmatprep.subr.bf16.mxu0 0
  %1266 = vmatpush1.bf16.msra.mxu0 0
  %1267 = vmatprep.subr.bf16.mxu0 0
  %1268 = vmatpush1.bf16.msra.mxu0 0
  %1269 = vmatprep.subr.bf16.mxu0 0
  %1270 = vmatpush1.bf16.msra.mxu0 0
  %1271 = vmatprep.subr.bf16.mxu0 0
  %1272 = vmatpush1.bf16.msra.mxu0 0
  %1273 = vmatprep.subr.bf16.mxu0 0
  %1274 = vmatpush1.bf16.msra.mxu0 %v300
  %1275 = vmatprep.subr.bf16.mxu0 0
  %1276 = vmatpush1.bf16.msra.mxu0 %v299
  %1277 = vmatprep.subr.bf16.mxu0 0
  %1278 = vmatpush2.bf16.msra.mxu0 0
  %1279 = vmatprep.subr.bf16.mxu0 0
  %1280 = vmatpush2.bf16.msra.mxu0 0
  %1281 = vmatprep.subr.bf16.mxu0 0
  %1282 = vmatpush2.bf16.msra.mxu0 0
  %1283 = vmatprep.subr.bf16.mxu0 0
  %1284 = vmatpush2.bf16.msra.mxu0 0
  %1285 = vmatprep.subr.bf16.mxu0 0
  %1286 = vmatpush2.bf16.msra.mxu0 0
  %1287 = vmatprep.subr.bf16.mxu0 0
  %1288 = vmatpush2.bf16.msra.mxu0 0
  %1289 = vmatprep.subr.bf16.mxu0 0
  %1290 = vmatpush2.bf16.msra.mxu0 0
  %1291 = vmatprep.subr.bf16.mxu0 0
  %1292 = vmatpush2.bf16.msra.mxu0 0
  %1293 = vmatprep.mubr.bf16.mxu0 0
  %1294 = vmatmul.mubr.bf16.gmra.mxu0 %v1259
  %v1295 = vpop.f32.mrf.mxu0
  %v1296 = vadd.f32 %v1250, %v1295
  %v1297 = vpop.f32.mrf.mxu0
  %v1298 = vpop.f32.mrf.mxu0
  %v1299 = vpop.f32.mrf.mxu0
  %1300 = vdwg.mxu0
  %v1301 = vxor.u32 %v1296, 2147483648
  %v1302 = vmul.f32 %v1301, 1.442695
  %v1303 = vpow.pop %v1302
  %v1304 = vadd.f32 %v1303, 1.0
  %v1305 = vrcp.pop %v1304
  %v1306 = vmul.f32 1.0, %v1305
  %v1307 = vtanh.pop %v1296
  %v1308 = vmul.f32 %v1306, %v1127
  %1310 = vrot.lane.b32.xlu0 %v1307, 64
  %v1311 = vpop.permute.xlu0 %1310
  %v1313 = vmul.f32 %v1306, %v1311
  %1315 = vrot.lane.b32.xlu0 %v1313, 32
  %v1316 = vpop.permute.xlu0 %1315
  %v1318 = vadd.f32 %v1308, %v1316
  %v1319 = vtanh.pop %v1318
  %1321 = vrot.lane.b32.xlu0 %v1319, 64
  %v1322 = vpop.permute.xlu0 %1321
  %v1324 = vmul.f32 %v1306, %v1322
  %v1325 = vpack.c.bf16 %v1205, %v1205
  %1327 = vrot.lane.b32.xlu0 %v1325, 32
  %v1328 = vpop.permute.xlu0 %1327
  %v1330 = vsel %vm161, %v1328, 0
  %1332 = vmatprep.subr.bf16.mxu0 0
  %1333 = vmatpush1.bf16.msra.mxu0 0
  %1334 = vmatprep.subr.bf16.mxu0 0
  %1335 = vmatpush1.bf16.msra.mxu0 0
  %1336 = vmatprep.subr.bf16.mxu0 0
  %1337 = vmatpush1.bf16.msra.mxu0 0
  %1338 = vmatprep.subr.bf16.mxu0 0
  %1339 = vmatpush1.bf16.msra.mxu0 0
  %1340 = vmatprep.subr.bf16.mxu0 0
  %1341 = vmatpush1.bf16.msra.mxu0 0
  %1342 = vmatprep.subr.bf16.mxu0 0
  %1343 = vmatpush1.bf16.msra.mxu0 0
  %1344 = vmatprep.subr.bf16.mxu0 0
  %1345 = vmatpush1.bf16.msra.mxu0 %v158
  %1346 = vmatprep.subr.bf16.mxu0 0
  %1347 = vmatpush1.bf16.msra.mxu0 %v157
  %1348 = vmatprep.subr.bf16.mxu0 0
  %1349 = vmatpush2.bf16.msra.mxu0 0
  %1350 = vmatprep.subr.bf16.mxu0 0
  %1351 = vmatpush2.bf16.msra.mxu0 0
  %1352 = vmatprep.subr.bf16.mxu0 0
  %1353 = vmatpush2.bf16.msra.mxu0 0
  %1354 = vmatprep.subr.bf16.mxu0 0
  %1355 = vmatpush2.bf16.msra.mxu0 0
  %1356 = vmatprep.subr.bf16.mxu0 0
  %1357 = vmatpush2.bf16.msra.mxu0 0
  %1358 = vmatprep.subr.bf16.mxu0 0
  %1359 = vmatpush2.bf16.msra.mxu0 0
  %1360 = vmatprep.subr.bf16.mxu0 0
  %1361 = vmatpush2.bf16.msra.mxu0 0
  %1362 = vmatprep.subr.bf16.mxu0 0
  %1363 = vmatpush2.bf16.msra.mxu0 0
  %1364 = vmatprep.mubr.bf16.mxu0 0
  %1365 = vmatmul.mubr.bf16.gmra.mxu0 %v1330
  %v1366 = vpop.f32.mrf.mxu0
  %v1367 = vadd.f32 0.0, %v1366
  %v1368 = vpop.f32.mrf.mxu0
  %v1369 = vpop.f32.mrf.mxu0
  %v1370 = vpop.f32.mrf.mxu0
  %1371 = vdwg.mxu0
  %v1372 = vadd.f32 %v138, %v1367
  %v1373 = vxor.u32 %v1372, 2147483648
  %v1374 = vmul.f32 %v1373, 1.442695
  %v1375 = vpow.pop %v1374
  %v1376 = vadd.f32 %v1375, 1.0
  %v1377 = vrcp.pop %v1376
  %v1378 = vmul.f32 1.0, %v1377
  %v1379 = vtanh.pop %v1372
  %v1380 = vmul.f32 %v1378, %v1199
  %1382 = vrot.lane.b32.xlu0 %v1379, 64
  %v1383 = vpop.permute.xlu0 %1382
  %v1385 = vmul.f32 %v1378, %v1383
  %1387 = vrot.lane.b32.xlu0 %v1385, 32
  %v1388 = vpop.permute.xlu0 %1387
  %v1390 = vadd.f32 %v1380, %v1388
  %v1391 = vtanh.pop %v1390
  %1393 = vrot.lane.b32.xlu0 %v1391, 64
  %v1394 = vpop.permute.xlu0 %1393
  %v1396 = vmul.f32 %v1378, %v1394
  %v1397 = vadd.f32 %v1396, %v232
  %v1398 = vpack.c.bf16 %v1397, %v1397
  %v1399 = vpack.c.bf16 %v1324, %v1324
  %1401 = vrot.lane.b32.xlu0 %v1399, 32
  %v1402 = vpop.permute.xlu0 %1401
  %v1404 = vsel %vm161, %v1402, 0
  %1406 = vmatprep.subr.bf16.mxu0 0
  %1407 = vmatpush1.bf16.msra.mxu0 0
  %1408 = vmatprep.subr.bf16.mxu0 0
  %1409 = vmatpush1.bf16.msra.mxu0 0
  %1410 = vmatprep.subr.bf16.mxu0 0
  %1411 = vmatpush1.bf16.msra.mxu0 0
  %1412 = vmatprep.subr.bf16.mxu0 0
  %1413 = vmatpush1.bf16.msra.mxu0 0
  %1414 = vmatprep.subr.bf16.mxu0 0
  %1415 = vmatpush1.bf16.msra.mxu0 0
  %1416 = vmatprep.subr.bf16.mxu0 0
  %1417 = vmatpush1.bf16.msra.mxu0 0
  %1418 = vmatprep.subr.bf16.mxu0 0
  %1419 = vmatpush1.bf16.msra.mxu0 %v245
  %1420 = vmatprep.subr.bf16.mxu0 0
  %1421 = vmatpush1.bf16.msra.mxu0 %v244
  %1422 = vmatprep.subr.bf16.mxu0 0
  %1423 = vmatpush2.bf16.msra.mxu0 0
  %1424 = vmatprep.subr.bf16.mxu0 0
  %1425 = vmatpush2.bf16.msra.mxu0 0
  %1426 = vmatprep.subr.bf16.mxu0 0
  %1427 = vmatpush2.bf16.msra.mxu0 0
  %1428 = vmatprep.subr.bf16.mxu0 0
  %1429 = vmatpush2.bf16.msra.mxu0 0
  %1430 = vmatprep.subr.bf16.mxu0 0
  %1431 = vmatpush2.bf16.msra.mxu0 0
  %1432 = vmatprep.subr.bf16.mxu0 0
  %1433 = vmatpush2.bf16.msra.mxu0 0
  %1434 = vmatprep.subr.bf16.mxu0 0
  %1435 = vmatpush2.bf16.msra.mxu0 0
  %1436 = vmatprep.subr.bf16.mxu0 0
  %1437 = vmatpush2.bf16.msra.mxu0 0
  %1438 = vmatprep.mubr.bf16.mxu0 0
  %1439 = vmatmul.mubr.bf16.gmra.mxu0 %v1404
  %v1440 = vpop.f32.mrf.mxu0
  %v1441 = vadd.f32 0.0, %v1440
  %v1442 = vpop.f32.mrf.mxu0
  %v1443 = vpop.f32.mrf.mxu0
  %v1444 = vpop.f32.mrf.mxu0
  %1445 = vdwg.mxu0
  %1447 = vrot.lane.b32.xlu0 %v1398, 32
  %v1448 = vpop.permute.xlu0 %1447
  %v1450 = vsel %vm161, %v1448, 0
  %1452 = vmatprep.subr.bf16.mxu0 0
  %1453 = vmatpush1.bf16.msra.mxu0 0
  %1454 = vmatprep.subr.bf16.mxu0 0
  %1455 = vmatpush1.bf16.msra.mxu0 0
  %1456 = vmatprep.subr.bf16.mxu0 0
  %1457 = vmatpush1.bf16.msra.mxu0 0
  %1458 = vmatprep.subr.bf16.mxu0 0
  %1459 = vmatpush1.bf16.msra.mxu0 0
  %1460 = vmatprep.subr.bf16.mxu0 0
  %1461 = vmatpush1.bf16.msra.mxu0 0
  %1462 = vmatprep.subr.bf16.mxu0 0
  %1463 = vmatpush1.bf16.msra.mxu0 0
  %1464 = vmatprep.subr.bf16.mxu0 0
  %1465 = vmatpush1.bf16.msra.mxu0 %v300
  %1466 = vmatprep.subr.bf16.mxu0 0
  %1467 = vmatpush1.bf16.msra.mxu0 %v299
  %1468 = vmatprep.subr.bf16.mxu0 0
  %1469 = vmatpush2.bf16.msra.mxu0 0
  %1470 = vmatprep.subr.bf16.mxu0 0
  %1471 = vmatpush2.bf16.msra.mxu0 0
  %1472 = vmatprep.subr.bf16.mxu0 0
  %1473 = vmatpush2.bf16.msra.mxu0 0
  %1474 = vmatprep.subr.bf16.mxu0 0
  %1475 = vmatpush2.bf16.msra.mxu0 0
  %1476 = vmatprep.subr.bf16.mxu0 0
  %1477 = vmatpush2.bf16.msra.mxu0 0
  %1478 = vmatprep.subr.bf16.mxu0 0
  %1479 = vmatpush2.bf16.msra.mxu0 0
  %1480 = vmatprep.subr.bf16.mxu0 0
  %1481 = vmatpush2.bf16.msra.mxu0 0
  %1482 = vmatprep.subr.bf16.mxu0 0
  %1483 = vmatpush2.bf16.msra.mxu0 0
  %1484 = vmatprep.mubr.bf16.mxu0 0
  %1485 = vmatmul.mubr.bf16.gmra.mxu0 %v1450
  %v1486 = vpop.f32.mrf.mxu0
  %v1487 = vadd.f32 %v1441, %v1486
  %v1488 = vpop.f32.mrf.mxu0
  %v1489 = vpop.f32.mrf.mxu0
  %v1490 = vpop.f32.mrf.mxu0
  %1491 = vdwg.mxu0
  %v1492 = vxor.u32 %v1487, 2147483648
  %v1493 = vmul.f32 %v1492, 1.442695
  %v1494 = vpow.pop %v1493
  %v1495 = vadd.f32 %v1494, 1.0
  %v1496 = vrcp.pop %v1495
  %v1497 = vmul.f32 1.0, %v1496
  %v1498 = vtanh.pop %v1487
  %v1499 = vmul.f32 %v1497, %v1318
  %1501 = vrot.lane.b32.xlu0 %v1498, 64
  %v1502 = vpop.permute.xlu0 %1501
  %v1504 = vmul.f32 %v1497, %v1502
  %1506 = vrot.lane.b32.xlu0 %v1504, 32
  %v1507 = vpop.permute.xlu0 %1506
  %v1509 = vadd.f32 %v1499, %v1507
  %v1510 = vtanh.pop %v1509
  %1512 = vrot.lane.b32.xlu0 %v1510, 64
  %v1513 = vpop.permute.xlu0 %1512
  %v1515 = vmul.f32 %v1497, %v1513
  %v1516 = vpack.c.bf16 %v1396, %v1396
  %1518 = vrot.lane.b32.xlu0 %v1516, 32
  %v1519 = vpop.permute.xlu0 %1518
  %v1521 = vsel %vm161, %v1519, 0
  %1523 = vmatprep.subr.bf16.mxu0 0
  %1524 = vmatpush1.bf16.msra.mxu0 0
  %1525 = vmatprep.subr.bf16.mxu0 0
  %1526 = vmatpush1.bf16.msra.mxu0 0
  %1527 = vmatprep.subr.bf16.mxu0 0
  %1528 = vmatpush1.bf16.msra.mxu0 0
  %1529 = vmatprep.subr.bf16.mxu0 0
  %1530 = vmatpush1.bf16.msra.mxu0 0
  %1531 = vmatprep.subr.bf16.mxu0 0
  %1532 = vmatpush1.bf16.msra.mxu0 0
  %1533 = vmatprep.subr.bf16.mxu0 0
  %1534 = vmatpush1.bf16.msra.mxu0 0
  %1535 = vmatprep.subr.bf16.mxu0 0
  %1536 = vmatpush1.bf16.msra.mxu0 %v158
  %1537 = vmatprep.subr.bf16.mxu0 0
  %1538 = vmatpush1.bf16.msra.mxu0 %v157
  %1539 = vmatprep.subr.bf16.mxu0 0
  %1540 = vmatpush2.bf16.msra.mxu0 0
  %1541 = vmatprep.subr.bf16.mxu0 0
  %1542 = vmatpush2.bf16.msra.mxu0 0
  %1543 = vmatprep.subr.bf16.mxu0 0
  %1544 = vmatpush2.bf16.msra.mxu0 0
  %1545 = vmatprep.subr.bf16.mxu0 0
  %1546 = vmatpush2.bf16.msra.mxu0 0
  %1547 = vmatprep.subr.bf16.mxu0 0
  %1548 = vmatpush2.bf16.msra.mxu0 0
  %1549 = vmatprep.subr.bf16.mxu0 0
  %1550 = vmatpush2.bf16.msra.mxu0 0
  %1551 = vmatprep.subr.bf16.mxu0 0
  %1552 = vmatpush2.bf16.msra.mxu0 0
  %1553 = vmatprep.subr.bf16.mxu0 0
  %1554 = vmatpush2.bf16.msra.mxu0 0
  %1555 = vmatprep.mubr.bf16.mxu0 0
  %1556 = vmatmul.mubr.bf16.gmra.mxu0 %v1521
  %v1557 = vpop.f32.mrf.mxu0
  %v1558 = vadd.f32 0.0, %v1557
  %v1559 = vpop.f32.mrf.mxu0
  %v1560 = vpop.f32.mrf.mxu0
  %v1561 = vpop.f32.mrf.mxu0
  %1562 = vdwg.mxu0
  %v1563 = vadd.f32 %v141, %v1558
  %v1564 = vxor.u32 %v1563, 2147483648
  %v1565 = vmul.f32 %v1564, 1.442695
  %v1566 = vpow.pop %v1565
  %v1567 = vadd.f32 %v1566, 1.0
  %v1568 = vrcp.pop %v1567
  %v1569 = vmul.f32 1.0, %v1568
  %v1570 = vtanh.pop %v1563
  %v1571 = vmul.f32 %v1569, %v1390
  %1573 = vrot.lane.b32.xlu0 %v1570, 64
  %v1574 = vpop.permute.xlu0 %1573
  %v1576 = vmul.f32 %v1569, %v1574
  %1578 = vrot.lane.b32.xlu0 %v1576, 32
  %v1579 = vpop.permute.xlu0 %1578
  %v1581 = vadd.f32 %v1571, %v1579
  %v1582 = vtanh.pop %v1581
  %1584 = vrot.lane.b32.xlu0 %v1582, 64
  %v1585 = vpop.permute.xlu0 %1584
  %v1587 = vmul.f32 %v1569, %v1585
  %v1588 = vadd.f32 %v1587, %v232
  %v1589 = vpack.c.bf16 %v1588, %v1588
  %v1590 = vpack.c.bf16 %v1515, %v1515
  %1592 = vrot.lane.b32.xlu0 %v1590, 32
  %v1593 = vpop.permute.xlu0 %1592
  %v1595 = vsel %vm161, %v1593, 0
  %1597 = vmatprep.subr.bf16.mxu0 0
  %1598 = vmatpush1.bf16.msra.mxu0 0
  %1599 = vmatprep.subr.bf16.mxu0 0
  %1600 = vmatpush1.bf16.msra.mxu0 0
  %1601 = vmatprep.subr.bf16.mxu0 0
  %1602 = vmatpush1.bf16.msra.mxu0 0
  %1603 = vmatprep.subr.bf16.mxu0 0
  %1604 = vmatpush1.bf16.msra.mxu0 0
  %1605 = vmatprep.subr.bf16.mxu0 0
  %1606 = vmatpush1.bf16.msra.mxu0 0
  %1607 = vmatprep.subr.bf16.mxu0 0
  %1608 = vmatpush1.bf16.msra.mxu0 0
  %1609 = vmatprep.subr.bf16.mxu0 0
  %1610 = vmatpush1.bf16.msra.mxu0 %v245
  %1611 = vmatprep.subr.bf16.mxu0 0
  %1612 = vmatpush1.bf16.msra.mxu0 %v244
  %1613 = vmatprep.subr.bf16.mxu0 0
  %1614 = vmatpush2.bf16.msra.mxu0 0
  %1615 = vmatprep.subr.bf16.mxu0 0
  %1616 = vmatpush2.bf16.msra.mxu0 0
  %1617 = vmatprep.subr.bf16.mxu0 0
  %1618 = vmatpush2.bf16.msra.mxu0 0
  %1619 = vmatprep.subr.bf16.mxu0 0
  %1620 = vmatpush2.bf16.msra.mxu0 0
  %1621 = vmatprep.subr.bf16.mxu0 0
  %1622 = vmatpush2.bf16.msra.mxu0 0
  %1623 = vmatprep.subr.bf16.mxu0 0
  %1624 = vmatpush2.bf16.msra.mxu0 0
  %1625 = vmatprep.subr.bf16.mxu0 0
  %1626 = vmatpush2.bf16.msra.mxu0 0
  %1627 = vmatprep.subr.bf16.mxu0 0
  %1628 = vmatpush2.bf16.msra.mxu0 0
  %1629 = vmatprep.mubr.bf16.mxu0 0
  %1630 = vmatmul.mubr.bf16.gmra.mxu0 %v1595
  %v1631 = vpop.f32.mrf.mxu0
  %v1632 = vadd.f32 0.0, %v1631
  %v1633 = vpop.f32.mrf.mxu0
  %v1634 = vpop.f32.mrf.mxu0
  %v1635 = vpop.f32.mrf.mxu0
  %1636 = vdwg.mxu0
  %1638 = vrot.lane.b32.xlu0 %v1589, 32
  %v1639 = vpop.permute.xlu0 %1638
  %v1641 = vsel %vm161, %v1639, 0
  %1643 = vmatprep.subr.bf16.mxu0 0
  %1644 = vmatpush1.bf16.msra.mxu0 0
  %1645 = vmatprep.subr.bf16.mxu0 0
  %1646 = vmatpush1.bf16.msra.mxu0 0
  %1647 = vmatprep.subr.bf16.mxu0 0
  %1648 = vmatpush1.bf16.msra.mxu0 0
  %1649 = vmatprep.subr.bf16.mxu0 0
  %1650 = vmatpush1.bf16.msra.mxu0 0
  %1651 = vmatprep.subr.bf16.mxu0 0
  %1652 = vmatpush1.bf16.msra.mxu0 0
  %1653 = vmatprep.subr.bf16.mxu0 0
  %1654 = vmatpush1.bf16.msra.mxu0 0
  %1655 = vmatprep.subr.bf16.mxu0 0
  %1656 = vmatpush1.bf16.msra.mxu0 %v300
  %1657 = vmatprep.subr.bf16.mxu0 0
  %1658 = vmatpush1.bf16.msra.mxu0 %v299
  %1659 = vmatprep.subr.bf16.mxu0 0
  %1660 = vmatpush2.bf16.msra.mxu0 0
  %1661 = vmatprep.subr.bf16.mxu0 0
  %1662 = vmatpush2.bf16.msra.mxu0 0
  %1663 = vmatprep.subr.bf16.mxu0 0
  %1664 = vmatpush2.bf16.msra.mxu0 0
  %1665 = vmatprep.subr.bf16.mxu0 0
  %1666 = vmatpush2.bf16.msra.mxu0 0
  %1667 = vmatprep.subr.bf16.mxu0 0
  %1668 = vmatpush2.bf16.msra.mxu0 0
  %1669 = vmatprep.subr.bf16.mxu0 0
  %1670 = vmatpush2.bf16.msra.mxu0 0
  %1671 = vmatprep.subr.bf16.mxu0 0
  %1672 = vmatpush2.bf16.msra.mxu0 0
  %1673 = vmatprep.subr.bf16.mxu0 0
  %1674 = vmatpush2.bf16.msra.mxu0 0
  %1675 = vmatprep.mubr.bf16.mxu0 0
  %1676 = vmatmul.mubr.bf16.gmra.mxu0 %v1641
  %v1677 = vpop.f32.mrf.mxu0
  %v1678 = vadd.f32 %v1632, %v1677
  %v1679 = vpop.f32.mrf.mxu0
  %v1680 = vpop.f32.mrf.mxu0
  %v1681 = vpop.f32.mrf.mxu0
  %1682 = vdwg.mxu0
  %v1683 = vxor.u32 %v1678, 2147483648
  %v1684 = vmul.f32 %v1683, 1.442695
  %v1685 = vpow.pop %v1684
  %v1686 = vadd.f32 %v1685, 1.0
  %v1687 = vrcp.pop %v1686
  %v1688 = vmul.f32 1.0, %v1687
  %v1689 = vtanh.pop %v1678
  %v1690 = vmul.f32 %v1688, %v1509
  %1692 = vrot.lane.b32.xlu0 %v1689, 64
  %v1693 = vpop.permute.xlu0 %1692
  %v1695 = vmul.f32 %v1688, %v1693
  %1697 = vrot.lane.b32.xlu0 %v1695, 32
  %v1698 = vpop.permute.xlu0 %1697
  %v1700 = vadd.f32 %v1690, %v1698
  %v1701 = vtanh.pop %v1700
  %1703 = vrot.lane.b32.xlu0 %v1701, 64
  %v1704 = vpop.permute.xlu0 %1703
  %v1706 = vmul.f32 %v1688, %v1704
  %v1707 = vld [vmem:[%s3] sm:$0x1]
  %v1708 = vld [vmem:[%s3 + $0x1] sm:$0x1]
  %v1709 = vlaneseq
  %v1710 = vshrl.u32 %v1709, 7
  %v1711 = vsub.s32 0, %v1710
  %v1712 = vrot.slane %v1707, %v1711
  %1714 = vrot.lane.b32.xlu0 %v1712, 96
  %v1715 = vpop.permute.xlu0 %1714
  %v1717 = vmul.f32 %v1706, %v1715
  %1719 = vrot.lane.b32.xlu0 %v1717, 32
  %v1720 = vpop.permute.xlu0 %1719
  %v1722 = vsel %vm161, %v1720, 0.0
  %1723 = vadd.xlane.f32.xlu0 %v1722
  %v1724 = vpop.xlane.xlu0 %1723
  %v1725 = vlaneseq
  %v1726 = vshrl.u32 %v1725, 7
  %v1727 = vsub.s32 0, %v1726
  %v1728 = vrot.slane %v1708, %v1727
  %v1729 = vadd.f32 %v1724, %v1728
  %vm1730 = vcmask 1024
  %1731 = vst.msk [vmem:[%s4] sm:$0x3] %vm1730, %v1729
  // Predicated region
  $region18: #{lstm_forward.1} parent=0 // pred_check
    _
  $region19: #{lstm_forward.1} parent=0 // pred_check_branch
    %1733 = sbr.rel (0) target = $region21
  $region20: #{lstm_forward.1} parent=0 // pred_region
    _
  $region21: #{lstm_forward.1} parent=0 // pred_fallthru
    _
  // Predicated region
  $region22: #{lstm_forward.1} parent=0 // pred_check
    _
  $region23: #{lstm_forward.1} parent=0 // pred_check_branch
    %1735 = sbr.rel (0) target = $region25
  $region24: #{lstm_forward.1} parent=0 // pred_region
    _
  $region25: #{lstm_forward.1} parent=0 // pred_fallthru
    _

</llo_original>
